<compile_context>
chip_gen: v7x
topology: tpu7x:2x2x1
jax: 0.10.0
libtpu: 0.0.40
codegen_flags: <defaults>
</compile_context>

<pallas_src>
import functools

import jax
import jax.numpy as jnp
from jax.experimental import pallas as pl
from jax.experimental.pallas import tpu as pltpu

# ---------------------------------------------------------------------------
# configuration (synthetic, mirrors cfg.model.*)
# ---------------------------------------------------------------------------
B = 2      # batch
T = 128    # sequence length (multiple of 128 -> lane-dense output blocks)
H = 32     # encoder_hidden (input_size)
F = 32     # variance_predictor.filter_size
K = 3      # variance_predictor.kernel_size (padding = (K-1)//2 = 1)
LN_EPS = 1e-5


# ---------------------------------------------------------------------------
# Pallas kernel: full VariancePredictor forward for one sequence per grid step
# ---------------------------------------------------------------------------
def variance_predictor_kernel(
    x_ref,      # (T, H)   f32  one sequence's activations
    mask_ref,   # (1, T)   i32  1 where position is masked (padding)
    w1_ref,     # (K, H, F) bf16 conv1 taps
    w2_ref,     # (K, F, F) bf16 conv2 taps
    p_ref,      # (8, F)   f32  packed: b1,g1,be1,b2,g2,be2,wl,[bl,0...]
    o_ref,      # (1, T)   f32  lane-dense output row
    *, seq_len,
):
    rows = seq_len

    # Row position inside the sequence: rows 0 / T-1 must not see the rolled-in
    # wraparound row -> this implements the conv zero padding.
    t_idx = jax.lax.broadcasted_iota(jnp.int32, (rows, 1), 0)
    has_prev = t_idx > 0
    has_next = t_idx < (rows - 1)

    # Packed small parameters (one VMEM tile).
    p = p_ref[...]
    b1, g1, be1 = p[0:1, :], p[1:2, :], p[2:3, :]
    b2, g2, be2 = p[3:4, :], p[4:5, :], p[5:6, :]
    wl = p[6:7, :]            # (1, F)
    bl = p[7:8, 0:1]          # (1, 1)

    def conv3(v_f32, w_ref):
        # prev/next rows via XLU sublane rotation (f32); wraparound rows zeroed
        # by the boundary predicates.  Operands cast to bf16 for the MXU,
        # accumulation in f32.
        prev = pltpu.roll(v_f32, shift=1, axis=0)
        nxt = pltpu.roll(v_f32, shift=rows - 1, axis=0)
        prev = jnp.where(has_prev, prev, 0.0)
        nxt = jnp.where(has_next, nxt, 0.0)
        acc = jnp.dot(prev.astype(jnp.bfloat16), w_ref[0],
                      preferred_element_type=jnp.float32)
        acc = acc + jnp.dot(v_f32.astype(jnp.bfloat16), w_ref[1],
                            preferred_element_type=jnp.float32)
        acc = acc + jnp.dot(nxt.astype(jnp.bfloat16), w_ref[2],
                            preferred_element_type=jnp.float32)
        return acc

    def layer_norm(v, g, be):
        # single fused sum / sum-of-squares pass, all stats in f32
        inv = 1.0 / v.shape[-1]
        mu = jnp.sum(v, axis=-1, keepdims=True) * inv
        ms = jnp.sum(v * v, axis=-1, keepdims=True) * inv
        var = ms - mu * mu
        return (v - mu) * jax.lax.rsqrt(var + LN_EPS) * g + be

    x = x_ref[...]                                            # (T, H) f32

    # ---- conv1d_1 (k=3, pad=1) -> ReLU -> LayerNorm ----
    h = conv3(x, w1_ref) + b1
    h = layer_norm(jnp.maximum(h, 0.0), g1, be1)

    # ---- conv1d_2 (k=3, pad=1) -> ReLU -> LayerNorm ----
    h2 = conv3(h, w2_ref) + b2
    h2 = layer_norm(jnp.maximum(h2, 0.0), g2, be2)

    # ---- linear_layer (F -> 1): contract F on both operands -> (1, T) ----
    logits = jax.lax.dot_general(
        wl, h2, (((1,), (1,)), ((), ())),
        preferred_element_type=jnp.float32) + bl              # (1, T)

    # exact masked_fill semantics (safe even if a masked row were Inf/NaN)
    o_ref[...] = jnp.where(mask_ref[...] != 0, 0.0, logits)


# ---------------------------------------------------------------------------
# wrapper
# ---------------------------------------------------------------------------
def variance_predictor(x, mask, params):
    """x: (B, T, H) float32, mask: (B, T) bool. Returns (B, T) float32."""
    b, t, h = x.shape
    f = params["g1"].shape[-1]
    rows = b * t
    assert t % 128 == 0, "toy config keeps T a multiple of 128 for lane-dense output"

    x2d = x.reshape(rows, h)                                  # fused row slab
    mask_flat = mask.astype(jnp.int32).reshape(1, rows)       # lane-dense mask
    w1 = params["w1"].astype(jnp.bfloat16)                    # (K, H, F)
    w2 = params["w2"].astype(jnp.bfloat16)                    # (K, F, F)
    packed = jnp.concatenate(
        [params["b1"], params["g1"], params["be1"],
         params["b2"], params["g2"], params["be2"],
         params["wl"],
         jnp.pad(params["bl"], ((0, 0), (0, f - 1)))],
        axis=0).astype(jnp.float32)                           # (8, F)

    kernel = functools.partial(variance_predictor_kernel, seq_len=t)

    out_flat = pl.pallas_call(
        kernel,
        out_shape=jax.ShapeDtypeStruct((1, rows), jnp.float32),
        grid=(b,),
        in_specs=[
            pl.BlockSpec((t, h), lambda i: (i, 0)),           # x rows of seq i
            pl.BlockSpec((1, t), lambda i: (0, i)),           # mask of seq i
            pl.BlockSpec((K, h, f), lambda i: (0, 0, 0)),     # conv1 weights
            pl.BlockSpec((K, f, f), lambda i: (0, 0, 0)),     # conv2 weights
            pl.BlockSpec((8, f), lambda i: (0, 0)),           # packed params
        ],
        out_specs=pl.BlockSpec((1, t), lambda i: (0, i)),
        compiler_params=pltpu.CompilerParams(
            dimension_semantics=("parallel",)),
    )(x2d, mask_flat, w1, w2, packed)
    return out_flat.reshape(b, t)


# ---------------------------------------------------------------------------
# pure-JAX reference (mirrors the kernel's bf16-on-MXU / f32-accumulate math)
# ---------------------------------------------------------------------------
def reference(x, mask, params):
    pad = (K - 1) // 2

    def conv(inp, w, bias):
        t = inp.shape[1]
        xp = jnp.pad(inp, ((0, 0), (pad, pad), (0, 0))).astype(jnp.bfloat16)
        wb = w.astype(jnp.bfloat16)
        out = jnp.zeros(inp.shape[:2] + (w.shape[-1],), jnp.float32)
        out = out + bias[None, :, :]
        for k in range(K):
            out = out + jnp.einsum("bti,io->bto", xp[:, k:k + t, :], wb[k],
                                   preferred_element_type=jnp.float32)
        return out

    def layernorm(v, g, be):
        inv = 1.0 / v.shape[-1]
        mu = jnp.sum(v, axis=-1, keepdims=True) * inv
        ms = jnp.sum(v * v, axis=-1, keepdims=True) * inv
        var = ms - mu * mu
        return (v - mu) * jax.lax.rsqrt(var + LN_EPS) * g + be

    h = layernorm(jax.nn.relu(conv(x, params["w1"], params["b1"])),
                  params["g1"], params["be1"])
    h = layernorm(jax.nn.relu(conv(h, params["w2"], params["b2"])),
                  params["g2"], params["be2"])
    out = jnp.einsum("btf,f->bt", h, params["wl"][0]) + params["bl"][0, 0]
    return jnp.where(mask, 0.0, out)


# ---------------------------------------------------------------------------
# deterministic synthetic parameters
# ---------------------------------------------------------------------------
def make_params(key):
    ks = jax.random.split(key, 10)

    def xavier(k, shape, fan_in, fan_out):
        lim = (6.0 / (fan_in + fan_out)) ** 0.5
        return jax.random.uniform(k, shape, jnp.float32, -lim, lim)

    return {
        "w1": xavier(ks[0], (K, H, F), H * K, F * K),
        "b1": 0.1 * jax.random.normal(ks[1], (1, F), jnp.float32),
        "g1": 1.0 + 0.1 * jax.random.normal(ks[2], (1, F), jnp.float32),
        "be1": 0.1 * jax.random.normal(ks[3], (1, F), jnp.float32),
        "w2": xavier(ks[4], (K, F, F), F * K, F * K),
        "b2": 0.1 * jax.random.normal(ks[5], (1, F), jnp.float32),
        "g2": 1.0 + 0.1 * jax.random.normal(ks[6], (1, F), jnp.float32),
        "be2": 0.1 * jax.random.normal(ks[7], (1, F), jnp.float32),
        "wl": xavier(ks[8], (1, F), F, 1),
        "bl": 0.05 * jax.random.normal(ks[9], (1, 1), jnp.float32),
    }


if __name__ == "__main__":
    key = jax.random.PRNGKey(0)
    k_x, k_p = jax.random.split(key)
    x = jax.random.normal(k_x, (B, T, H), jnp.float32)
    # mask out the tail of each sequence (like padding positions)
    lengths = jnp.array([T, T - 37])
    mask = jnp.arange(T)[None, :] >= lengths[:, None]        # (B, T) bool

    params = make_params(k_p)

    out = jax.block_until_ready(variance_predictor(x, mask, params))
    ref = reference(x, mask, params)

    assert out.shape == (B, T)
    assert bool(jnp.all(jnp.isfinite(out)))
    max_err = float(jnp.max(jnp.abs(out - ref)))
    assert jnp.allclose(out, ref, atol=1e-2, rtol=1e-2), (
        f"mismatch vs reference, max abs err = {max_err}")

    print("KERNEL_OK")
</pallas_src>

<mosaic_0001>
module attributes {stable_mosaic.version = 11 : i64} {
  func.func @variance_predictor_kernel(%arg0: i32, %arg1: memref<128x32xf32, #tpu.memory_space<vmem>>, %arg2: memref<1x128xi32, #tpu.memory_space<vmem>>, %arg3: memref<3x32x32xbf16, #tpu.memory_space<vmem>>, %arg4: memref<3x32x32xbf16, #tpu.memory_space<vmem>>, %arg5: memref<8x32xf32, #tpu.memory_space<vmem>>, %arg6: memref<1x128xf32, #tpu.memory_space<vmem>>) attributes {dimension_semantics = [#tpu.dimension_semantics<parallel>], iteration_bounds = array<i64: 2>, scalar_prefetch = 0 : i64, scratch_operands = 0 : i64, tpu.core_type = #tpu.core_type<tc>, window_params = [{transform_indices = @transform_0, window_bounds = array<i64: 128, 32>}, {transform_indices = @transform_1, window_bounds = array<i64: 1, 128>}, {pipeline_mode = #tpu.pipeline_mode<synchronous>, transform_indices = @transform_2, window_bounds = array<i64: 3, 32, 32>}, {pipeline_mode = #tpu.pipeline_mode<synchronous>, transform_indices = @transform_3, window_bounds = array<i64: 3, 32, 32>}, {pipeline_mode = #tpu.pipeline_mode<synchronous>, transform_indices = @transform_4, window_bounds = array<i64: 8, 32>}, {transform_indices = @transform_5, window_bounds = array<i64: 1, 128>}]} {
    %0 = tpu.iota {dimensions = array<i32: 0>} : vector<128x1xi32>
    %c0_i32 = arith.constant 0 : i32
    %1 = vector.broadcast %c0_i32 : i32 to vector<128x1xi32>
    %2 = arith.cmpi sgt, %0, %1 : vector<128x1xi32>
    %c127_i32 = arith.constant 127 : i32
    %3 = vector.broadcast %c127_i32 : i32 to vector<128x1xi32>
    %4 = arith.cmpi slt, %0, %3 : vector<128x1xi32>
    %c0 = arith.constant 0 : index
    %c0_0 = arith.constant 0 : index
    %5 = vector.load %arg5[%c0, %c0_0] : memref<8x32xf32, #tpu.memory_space<vmem>>, vector<8x32xf32>
    %6 = vector.extract_strided_slice %5 {offsets = [0, 0], sizes = [1, 32], strides = [1, 1]} : vector<8x32xf32> to vector<1x32xf32>
    %7 = vector.extract_strided_slice %5 {offsets = [1, 0], sizes = [1, 32], strides = [1, 1]} : vector<8x32xf32> to vector<1x32xf32>
    %8 = vector.extract_strided_slice %5 {offsets = [2, 0], sizes = [1, 32], strides = [1, 1]} : vector<8x32xf32> to vector<1x32xf32>
    %9 = vector.extract_strided_slice %5 {offsets = [3, 0], sizes = [1, 32], strides = [1, 1]} : vector<8x32xf32> to vector<1x32xf32>
    %10 = vector.extract_strided_slice %5 {offsets = [4, 0], sizes = [1, 32], strides = [1, 1]} : vector<8x32xf32> to vector<1x32xf32>
    %11 = vector.extract_strided_slice %5 {offsets = [5, 0], sizes = [1, 32], strides = [1, 1]} : vector<8x32xf32> to vector<1x32xf32>
    %12 = vector.extract_strided_slice %5 {offsets = [6, 0], sizes = [1, 32], strides = [1, 1]} : vector<8x32xf32> to vector<1x32xf32>
    %13 = vector.extract_strided_slice %5 {offsets = [7, 0], sizes = [1, 1], strides = [1, 1]} : vector<8x32xf32> to vector<1x1xf32>
    %c0_1 = arith.constant 0 : index
    %c0_2 = arith.constant 0 : index
    %14 = vector.load %arg1[%c0_1, %c0_2] : memref<128x32xf32, #tpu.memory_space<vmem>>, vector<128x32xf32>
    %c1_i32 = arith.constant 1 : i32
    %15 = tpu.dynamic_rotate %14 by %c1_i32 dim 0 : vector<128x32xf32>, i32 -> vector<128x32xf32>
    %c127_i32_3 = arith.constant 127 : i32
    %16 = tpu.dynamic_rotate %14 by %c127_i32_3 dim 0 : vector<128x32xf32>, i32 -> vector<128x32xf32>
    %cst = arith.constant 0.000000e+00 : f32
    %17 = vector.shape_cast %2 : vector<128x1xi1> to vector<128x1xi1>
    %18 = vector.broadcast %17 : vector<128x1xi1> to vector<128x32xi1>
    %19 = vector.broadcast %cst : f32 to vector<128x32xf32>
    %20 = arith.select %18, %15, %19 : vector<128x32xi1>, vector<128x32xf32>
    %cst_4 = arith.constant 0.000000e+00 : f32
    %21 = vector.shape_cast %4 : vector<128x1xi1> to vector<128x1xi1>
    %22 = vector.broadcast %21 : vector<128x1xi1> to vector<128x32xi1>
    %23 = vector.broadcast %cst_4 : f32 to vector<128x32xf32>
    %24 = arith.select %22, %16, %23 : vector<128x32xi1>, vector<128x32xf32>
    %25 = arith.truncf %20 : vector<128x32xf32> to vector<128x32xbf16>
    %c0_5 = arith.constant 0 : index
    %c0_6 = arith.constant 0 : index
    %c0_7 = arith.constant 0 : index
    %26 = vector.load %arg3[%c0_5, %c0_6, %c0_7] : memref<3x32x32xbf16, #tpu.memory_space<vmem>>, vector<1x32x32xbf16>
    %27 = vector.shape_cast %26 : vector<1x32x32xbf16> to vector<32x32xbf16>
    %cst_8 = arith.constant dense<0.000000e+00> : vector<128x32xf32>
    %28 = tpu.matmul %25, %27, %cst_8 {dimension_numbers = #tpu.dot_dimension_numbers<[1], [0], [0], [1], [0, 0, 1, 1], [], []>} : vector<128x32xbf16>, vector<32x32xbf16>, vector<128x32xf32> -> vector<128x32xf32>
    %29 = arith.truncf %14 : vector<128x32xf32> to vector<128x32xbf16>
    %c1 = arith.constant 1 : index
    %c0_9 = arith.constant 0 : index
    %c0_10 = arith.constant 0 : index
    %30 = vector.load %arg3[%c1, %c0_9, %c0_10] : memref<3x32x32xbf16, #tpu.memory_space<vmem>>, vector<1x32x32xbf16>
    %31 = vector.shape_cast %30 : vector<1x32x32xbf16> to vector<32x32xbf16>
    %cst_11 = arith.constant dense<0.000000e+00> : vector<128x32xf32>
    %32 = tpu.matmul %29, %31, %cst_11 {dimension_numbers = #tpu.dot_dimension_numbers<[1], [0], [0], [1], [0, 0, 1, 1], [], []>} : vector<128x32xbf16>, vector<32x32xbf16>, vector<128x32xf32> -> vector<128x32xf32>
    %33 = arith.addf %28, %32 : vector<128x32xf32>
    %34 = arith.truncf %24 : vector<128x32xf32> to vector<128x32xbf16>
    %c2 = arith.constant 2 : index
    %c0_12 = arith.constant 0 : index
    %c0_13 = arith.constant 0 : index
    %35 = vector.load %arg3[%c2, %c0_12, %c0_13] : memref<3x32x32xbf16, #tpu.memory_space<vmem>>, vector<1x32x32xbf16>
    %36 = vector.shape_cast %35 : vector<1x32x32xbf16> to vector<32x32xbf16>
    %cst_14 = arith.constant dense<0.000000e+00> : vector<128x32xf32>
    %37 = tpu.matmul %34, %36, %cst_14 {dimension_numbers = #tpu.dot_dimension_numbers<[1], [0], [0], [1], [0, 0, 1, 1], [], []>} : vector<128x32xbf16>, vector<32x32xbf16>, vector<128x32xf32> -> vector<128x32xf32>
    %38 = arith.addf %33, %37 : vector<128x32xf32>
    %39 = vector.broadcast %6 : vector<1x32xf32> to vector<128x32xf32>
    %40 = arith.addf %38, %39 : vector<128x32xf32>
    %cst_15 = arith.constant 0.000000e+00 : f32
    %41 = vector.broadcast %cst_15 : f32 to vector<128x32xf32>
    %42 = arith.maximumf %40, %41 : vector<128x32xf32>
    %cst_16 = arith.constant dense<0.000000e+00> : vector<128xf32>
    %43 = vector.multi_reduction <add>, %42, %cst_16 [1] : vector<128x32xf32> to vector<128xf32>
    %44 = vector.shape_cast %43 : vector<128xf32> to vector<128x1xf32>
    %cst_17 = arith.constant 3.125000e-02 : f32
    %45 = vector.broadcast %cst_17 : f32 to vector<128x1xf32>
    %46 = arith.mulf %44, %45 : vector<128x1xf32>
    %47 = arith.mulf %42, %42 : vector<128x32xf32>
    %cst_18 = arith.constant dense<0.000000e+00> : vector<128xf32>
    %48 = vector.multi_reduction <add>, %47, %cst_18 [1] : vector<128x32xf32> to vector<128xf32>
    %49 = vector.shape_cast %48 : vector<128xf32> to vector<128x1xf32>
    %cst_19 = arith.constant 3.125000e-02 : f32
    %50 = vector.broadcast %cst_19 : f32 to vector<128x1xf32>
    %51 = arith.mulf %49, %50 : vector<128x1xf32>
    %52 = arith.mulf %46, %46 : vector<128x1xf32>
    %53 = arith.subf %51, %52 : vector<128x1xf32>
    %54 = vector.broadcast %46 : vector<128x1xf32> to vector<128x32xf32>
    %55 = arith.subf %42, %54 : vector<128x32xf32>
    %cst_20 = arith.constant 9.99999974E-6 : f32
    %56 = vector.broadcast %cst_20 : f32 to vector<128x1xf32>
    %57 = arith.addf %53, %56 : vector<128x1xf32>
    %58 = math.rsqrt %57 : vector<128x1xf32>
    %59 = vector.broadcast %58 : vector<128x1xf32> to vector<128x32xf32>
    %60 = arith.mulf %55, %59 : vector<128x32xf32>
    %61 = vector.broadcast %7 : vector<1x32xf32> to vector<128x32xf32>
    %62 = arith.mulf %60, %61 : vector<128x32xf32>
    %63 = vector.broadcast %8 : vector<1x32xf32> to vector<128x32xf32>
    %64 = arith.addf %62, %63 : vector<128x32xf32>
    %c1_i32_21 = arith.constant 1 : i32
    %65 = tpu.dynamic_rotate %64 by %c1_i32_21 dim 0 : vector<128x32xf32>, i32 -> vector<128x32xf32>
    %c127_i32_22 = arith.constant 127 : i32
    %66 = tpu.dynamic_rotate %64 by %c127_i32_22 dim 0 : vector<128x32xf32>, i32 -> vector<128x32xf32>
    %cst_23 = arith.constant 0.000000e+00 : f32
    %67 = vector.shape_cast %2 : vector<128x1xi1> to vector<128x1xi1>
    %68 = vector.broadcast %67 : vector<128x1xi1> to vector<128x32xi1>
    %69 = vector.broadcast %cst_23 : f32 to vector<128x32xf32>
    %70 = arith.select %68, %65, %69 : vector<128x32xi1>, vector<128x32xf32>
    %cst_24 = arith.constant 0.000000e+00 : f32
    %71 = vector.shape_cast %4 : vector<128x1xi1> to vector<128x1xi1>
    %72 = vector.broadcast %71 : vector<128x1xi1> to vector<128x32xi1>
    %73 = vector.broadcast %cst_24 : f32 to vector<128x32xf32>
    %74 = arith.select %72, %66, %73 : vector<128x32xi1>, vector<128x32xf32>
    %75 = arith.truncf %70 : vector<128x32xf32> to vector<128x32xbf16>
    %c0_25 = arith.constant 0 : index
    %c0_26 = arith.constant 0 : index
    %c0_27 = arith.constant 0 : index
    %76 = vector.load %arg4[%c0_25, %c0_26, %c0_27] : memref<3x32x32xbf16, #tpu.memory_space<vmem>>, vector<1x32x32xbf16>
    %77 = vector.shape_cast %76 : vector<1x32x32xbf16> to vector<32x32xbf16>
    %cst_28 = arith.constant dense<0.000000e+00> : vector<128x32xf32>
    %78 = tpu.matmul %75, %77, %cst_28 {dimension_numbers = #tpu.dot_dimension_numbers<[1], [0], [0], [1], [0, 0, 1, 1], [], []>} : vector<128x32xbf16>, vector<32x32xbf16>, vector<128x32xf32> -> vector<128x32xf32>
    %79 = arith.truncf %64 : vector<128x32xf32> to vector<128x32xbf16>
    %c1_29 = arith.constant 1 : index
    %c0_30 = arith.constant 0 : index
    %c0_31 = arith.constant 0 : index
    %80 = vector.load %arg4[%c1_29, %c0_30, %c0_31] : memref<3x32x32xbf16, #tpu.memory_space<vmem>>, vector<1x32x32xbf16>
    %81 = vector.shape_cast %80 : vector<1x32x32xbf16> to vector<32x32xbf16>
    %cst_32 = arith.constant dense<0.000000e+00> : vector<128x32xf32>
    %82 = tpu.matmul %79, %81, %cst_32 {dimension_numbers = #tpu.dot_dimension_numbers<[1], [0], [0], [1], [0, 0, 1, 1], [], []>} : vector<128x32xbf16>, vector<32x32xbf16>, vector<128x32xf32> -> vector<128x32xf32>
    %83 = arith.addf %78, %82 : vector<128x32xf32>
    %84 = arith.truncf %74 : vector<128x32xf32> to vector<128x32xbf16>
    %c2_33 = arith.constant 2 : index
    %c0_34 = arith.constant 0 : index
    %c0_35 = arith.constant 0 : index
    %85 = vector.load %arg4[%c2_33, %c0_34, %c0_35] : memref<3x32x32xbf16, #tpu.memory_space<vmem>>, vector<1x32x32xbf16>
    %86 = vector.shape_cast %85 : vector<1x32x32xbf16> to vector<32x32xbf16>
    %cst_36 = arith.constant dense<0.000000e+00> : vector<128x32xf32>
    %87 = tpu.matmul %84, %86, %cst_36 {dimension_numbers = #tpu.dot_dimension_numbers<[1], [0], [0], [1], [0, 0, 1, 1], [], []>} : vector<128x32xbf16>, vector<32x32xbf16>, vector<128x32xf32> -> vector<128x32xf32>
    %88 = arith.addf %83, %87 : vector<128x32xf32>
    %89 = vector.broadcast %9 : vector<1x32xf32> to vector<128x32xf32>
    %90 = arith.addf %88, %89 : vector<128x32xf32>
    %cst_37 = arith.constant 0.000000e+00 : f32
    %91 = vector.broadcast %cst_37 : f32 to vector<128x32xf32>
    %92 = arith.maximumf %90, %91 : vector<128x32xf32>
    %cst_38 = arith.constant dense<0.000000e+00> : vector<128xf32>
    %93 = vector.multi_reduction <add>, %92, %cst_38 [1] : vector<128x32xf32> to vector<128xf32>
    %94 = vector.shape_cast %93 : vector<128xf32> to vector<128x1xf32>
    %cst_39 = arith.constant 3.125000e-02 : f32
    %95 = vector.broadcast %cst_39 : f32 to vector<128x1xf32>
    %96 = arith.mulf %94, %95 : vector<128x1xf32>
    %97 = arith.mulf %92, %92 : vector<128x32xf32>
    %cst_40 = arith.constant dense<0.000000e+00> : vector<128xf32>
    %98 = vector.multi_reduction <add>, %97, %cst_40 [1] : vector<128x32xf32> to vector<128xf32>
    %99 = vector.shape_cast %98 : vector<128xf32> to vector<128x1xf32>
    %cst_41 = arith.constant 3.125000e-02 : f32
    %100 = vector.broadcast %cst_41 : f32 to vector<128x1xf32>
    %101 = arith.mulf %99, %100 : vector<128x1xf32>
    %102 = arith.mulf %96, %96 : vector<128x1xf32>
    %103 = arith.subf %101, %102 : vector<128x1xf32>
    %104 = vector.broadcast %96 : vector<128x1xf32> to vector<128x32xf32>
    %105 = arith.subf %92, %104 : vector<128x32xf32>
    %cst_42 = arith.constant 9.99999974E-6 : f32
    %106 = vector.broadcast %cst_42 : f32 to vector<128x1xf32>
    %107 = arith.addf %103, %106 : vector<128x1xf32>
    %108 = math.rsqrt %107 : vector<128x1xf32>
    %109 = vector.broadcast %108 : vector<128x1xf32> to vector<128x32xf32>
    %110 = arith.mulf %105, %109 : vector<128x32xf32>
    %111 = vector.broadcast %10 : vector<1x32xf32> to vector<128x32xf32>
    %112 = arith.mulf %110, %111 : vector<128x32xf32>
    %113 = vector.broadcast %11 : vector<1x32xf32> to vector<128x32xf32>
    %114 = arith.addf %112, %113 : vector<128x32xf32>
    %cst_43 = arith.constant dense<0.000000e+00> : vector<1x128xf32>
    %115 = tpu.matmul %12, %114, %cst_43 {dimension_numbers = #tpu.dot_dimension_numbers<[1], [1], [0], [0], [0, 0, 1, 0], [], []>} : vector<1x32xf32>, vector<128x32xf32>, vector<1x128xf32> -> vector<1x128xf32>
    %116 = vector.broadcast %13 : vector<1x1xf32> to vector<1x128xf32>
    %117 = arith.addf %115, %116 : vector<1x128xf32>
    %c0_44 = arith.constant 0 : index
    %c0_45 = arith.constant 0 : index
    %118 = vector.load %arg2[%c0_44, %c0_45] : memref<1x128xi32, #tpu.memory_space<vmem>>, vector<1x128xi32>
    %c0_i32_46 = arith.constant 0 : i32
    %119 = vector.broadcast %c0_i32_46 : i32 to vector<1x128xi32>
    %120 = arith.cmpi ne, %118, %119 : vector<1x128xi32>
    %cst_47 = arith.constant 0.000000e+00 : f32
    %121 = vector.broadcast %cst_47 : f32 to vector<1x128xf32>
    %122 = arith.select %120, %121, %117 : vector<1x128xi1>, vector<1x128xf32>
    %c0_48 = arith.constant 0 : index
    %c0_49 = arith.constant 0 : index
    %123 = vector.load %arg6[%c0_48, %c0_49] : memref<1x128xf32, #tpu.memory_space<vmem>>, vector<1x128xf32>
    tpu.vector_store %arg6[%c0_48, %c0_49], %122 {strides = array<i32>} : memref<1x128xf32, #tpu.memory_space<vmem>>, vector<1x128xf32>,
    return
  }
  func.func @transform_0(%arg0: i32) -> (i32, i32) {
    %c0_i32 = arith.constant 0 : i32
    %c0_i32_0 = arith.constant 0 : i32
    return %arg0, %c0_i32 : i32, i32
  }
  func.func @transform_1(%arg0: i32) -> (i32, i32) {
    %c0_i32 = arith.constant 0 : i32
    %c0_i32_0 = arith.constant 0 : i32
    return %c0_i32, %arg0 : i32, i32
  }
  func.func @transform_2(%arg0: i32) -> (i32, i32, i32) {
    %c0_i32 = arith.constant 0 : i32
    %c0_i32_0 = arith.constant 0 : i32
    %c0_i32_1 = arith.constant 0 : i32
    %c0_i32_2 = arith.constant 0 : i32
    return %c0_i32, %c0_i32_0, %c0_i32_1 : i32, i32, i32
  }
  func.func @transform_3(%arg0: i32) -> (i32, i32, i32) {
    %c0_i32 = arith.constant 0 : i32
    %c0_i32_0 = arith.constant 0 : i32
    %c0_i32_1 = arith.constant 0 : i32
    %c0_i32_2 = arith.constant 0 : i32
    return %c0_i32, %c0_i32_0, %c0_i32_1 : i32, i32, i32
  }
  func.func @transform_4(%arg0: i32) -> (i32, i32) {
    %c0_i32 = arith.constant 0 : i32
    %c0_i32_0 = arith.constant 0 : i32
    %c0_i32_1 = arith.constant 0 : i32
    return %c0_i32, %c0_i32_0 : i32, i32
  }
  func.func @transform_5(%arg0: i32) -> (i32, i32) {
    %c0_i32 = arith.constant 0 : i32
    %c0_i32_0 = arith.constant 0 : i32
    return %c0_i32, %arg0 : i32, i32
  }
}

</mosaic_0001>

<llo_original>
// kernel: tpu_custom_call.1
$region0: #{tpu_custom_call.1}
  #allocation0 [shape = 'u32[]', space=smem, size = 0x4, offset = 0x4, fixed_abs, tag = 'smem constant byte address 0x4 - core index']
  #allocation1 [shape = 'u32[144,128]{1,0:T(1,128)}', space=vmem, size = 0x12000, scoped, tag = 'internal scratch']
  %s0 = inlined_call_operand.vmem [shape: f32[256,32], index: 0, kind: input, shape index: {}]
  %s1 = inlined_call_operand.vmem [shape: s32[1,256], index: 1, kind: input, shape index: {}]
  %s2 = inlined_call_operand.vmem [shape: bf16[3,32,32], index: 2, kind: input, shape index: {}]
  %s3 = inlined_call_operand.vmem [shape: bf16[3,32,32], index: 3, kind: input, shape index: {}]
  %s4 = inlined_call_operand.vmem [shape: f32[8,32], index: 4, kind: input, shape index: {}]
  %s5 = inlined_call_operand.hbm [shape: f32[1,256], index: 5, kind: output, shape index: {}]
  %s6 = sld [smem:[#allocation0]]
  $region53: #{tpu_custom_call.1} parent=0
    _
  %s8 = ssub.s32 1, %s6
  %s9 = scalar_select 0, %s8, %s6
  $region1: #{tpu_custom_call.1} parent=0
    #allocation2 [shape = 'u8[1024]{0}', space=vmem, size = 0x400, scoped, tag = 'output window, operand 0']
    #allocation3 [shape = 's32[2]{0}', space=sflag, size = 0x8, scoped, tag = 'scoped memory for tpu_custom_call.1']
    %10 = vsyncpa [#allocation3], 0
    %s11 = scalar_lea.sflag [#allocation3], 1
    %12 = vsyncpa %s11, 0
    loop: start=0, step=1, limit=4
    $region2: #{tpu_custom_call.1} parent=1 // loop_pre_header
      _
    $region3: #{tpu_custom_call.1} parent=1 // loop_header
      %s14 = sphi 0, %s18
      %p15 = scmp.ge.s32.totalorder %s14, 4
      %s24 = sphi 0, %s26
      %s27 = sphi 0, %s24
      %s28 = sphi 0, %s27
      %s44 = sphi 0, %s28
      %s50 = sphi 0, %s52
      %s53 = sphi 0, %s50
      %s54 = sphi 0, %s53
      %s70 = sphi 0, %s54
      %s74 = sphi 0, %s74
      %s76 = sphi 0, %s74
      %s77 = sphi 0, %s76
      %s91 = sphi 0, %s77
      %s95 = sphi 0, %s95
      %s97 = sphi 0, %s95
      %s98 = sphi 0, %s97
      %s112 = sphi 0, %s98
      %s116 = sphi 0, %s116
      %s118 = sphi 0, %s116
      %s119 = sphi 0, %s118
      %s133 = sphi 0, %s119
      %s139 = sphi 0, %s141
      %s142 = sphi 0, %s139
      %s143 = sphi 0, %s142
      %s159 = sphi 0, %s143
    $region4: #{tpu_custom_call.1} parent=1 // loop_header_branch
      %17 = sbr.rel (%p15) target = $region8
    $region5: #{tpu_custom_call.1} parent=1 // loop_body
      %s19 = ssub.s32 %s14, 1
      %s20 = ssub.s32 %s14, 2
      %s21 = sadd.s32 %s14, 1
      %s22 = ssub.s32 %s14, %s21
      %p23 = scmp.eq.s32.totalorder %s22, 0
      %s25 = sadd.s32 %s24, 1
      %s26 = scalar_select %p23, %s24, %s25
      %p29 = pneg %p23
      %p30 = scmp.eq.s32.totalorder %s14, 1
      %p31 = por %p29, %p30
      %p32 = scmp.ne.s32.totalorder %s24, %s27
      %p33 = scmp.eq.s32.totalorder %s14, 0
      %p34 = por %p32, %p33
      %p35 = scmp.ne.s32.totalorder %s24, %s27
      %p36 = scmp.eq.s32.totalorder %s19, 1
      %p37 = por %p35, %p36
      %p38 = scmp.ne.s32.totalorder %s27, %s28
      %p39 = scmp.eq.s32.totalorder %s19, 0
      %p40 = por %p38, %p39
      %p41 = scmp.ne.s32.totalorder %s27, %s28
      %p42 = scmp.eq.s32.totalorder %s20, 1
      %p43 = por %p41, %p42
      %p45 = scmp.ne.s32.totalorder %s28, %s44
      %p46 = scmp.eq.s32.totalorder %s20, 0
      %p47 = por %p45, %p46
      %s48 = ssub.s32 %s14, %s21
      %p49 = scmp.eq.s32.totalorder %s48, 0
      %s51 = sadd.s32 %s50, 1
      %s52 = scalar_select %p49, %s50, %s51
      %p55 = pneg %p49
      %p56 = scmp.eq.s32.totalorder %s14, 1
      %p57 = por %p55, %p56
      %p58 = scmp.ne.s32.totalorder %s50, %s53
      %p59 = scmp.eq.s32.totalorder %s14, 0
      %p60 = por %p58, %p59
      %p61 = scmp.ne.s32.totalorder %s50, %s53
      %p62 = scmp.eq.s32.totalorder %s19, 1
      %p63 = por %p61, %p62
      %p64 = scmp.ne.s32.totalorder %s53, %s54
      %p65 = scmp.eq.s32.totalorder %s19, 0
      %p66 = por %p64, %p65
      %p67 = scmp.ne.s32.totalorder %s53, %s54
      %p68 = scmp.eq.s32.totalorder %s20, 1
      %p69 = por %p67, %p68
      %p71 = scmp.ne.s32.totalorder %s54, %s70
      %p72 = scmp.eq.s32.totalorder %s20, 0
      %p73 = por %p71, %p72
      %s75 = sadd.s32 %s74, 1
      %p78 = scmp.eq.s32.totalorder %s14, 1
      %p79 = scmp.ne.s32.totalorder %s74, %s76
      %p80 = scmp.eq.s32.totalorder %s14, 0
      %p81 = por %p79, %p80
      %p82 = scmp.ne.s32.totalorder %s74, %s76
      %p83 = scmp.eq.s32.totalorder %s19, 1
      %p84 = por %p82, %p83
      %p85 = scmp.ne.s32.totalorder %s76, %s77
      %p86 = scmp.eq.s32.totalorder %s19, 0
      %p87 = por %p85, %p86
      %p88 = scmp.ne.s32.totalorder %s76, %s77
      %p89 = scmp.eq.s32.totalorder %s20, 1
      %p90 = por %p88, %p89
      %p92 = scmp.ne.s32.totalorder %s77, %s91
      %p93 = scmp.eq.s32.totalorder %s20, 0
      %p94 = por %p92, %p93
      %s96 = sadd.s32 %s95, 1
      %p99 = scmp.eq.s32.totalorder %s14, 1
      %p100 = scmp.ne.s32.totalorder %s95, %s97
      %p101 = scmp.eq.s32.totalorder %s14, 0
      %p102 = por %p100, %p101
      %p103 = scmp.ne.s32.totalorder %s95, %s97
      %p104 = scmp.eq.s32.totalorder %s19, 1
      %p105 = por %p103, %p104
      %p106 = scmp.ne.s32.totalorder %s97, %s98
      %p107 = scmp.eq.s32.totalorder %s19, 0
      %p108 = por %p106, %p107
      %p109 = scmp.ne.s32.totalorder %s97, %s98
      %p110 = scmp.eq.s32.totalorder %s20, 1
      %p111 = por %p109, %p110
      %p113 = scmp.ne.s32.totalorder %s98, %s112
      %p114 = scmp.eq.s32.totalorder %s20, 0
      %p115 = por %p113, %p114
      %s117 = sadd.s32 %s116, 1
      %p120 = scmp.eq.s32.totalorder %s14, 1
      %p121 = scmp.ne.s32.totalorder %s116, %s118
      %p122 = scmp.eq.s32.totalorder %s14, 0
      %p123 = por %p121, %p122
      %p124 = scmp.ne.s32.totalorder %s116, %s118
      %p125 = scmp.eq.s32.totalorder %s19, 1
      %p126 = por %p124, %p125
      %p127 = scmp.ne.s32.totalorder %s118, %s119
      %p128 = scmp.eq.s32.totalorder %s19, 0
      %p129 = por %p127, %p128
      %p130 = scmp.ne.s32.totalorder %s118, %s119
      %p131 = scmp.eq.s32.totalorder %s20, 1
      %p132 = por %p130, %p131
      %p134 = scmp.ne.s32.totalorder %s119, %s133
      %p135 = scmp.eq.s32.totalorder %s20, 0
      %p136 = por %p134, %p135
      %s137 = ssub.s32 %s14, %s21
      %p138 = scmp.eq.s32.totalorder %s137, 0
      %s140 = sadd.s32 %s139, 1
      %s141 = scalar_select %p138, %s139, %s140
      %p144 = pneg %p138
      %p145 = scmp.eq.s32.totalorder %s14, 1
      %p146 = por %p144, %p145
      %p147 = scmp.ne.s32.totalorder %s139, %s142
      %p148 = scmp.eq.s32.totalorder %s14, 0
      %p149 = por %p147, %p148
      %p150 = scmp.ne.s32.totalorder %s139, %s142
      %p151 = scmp.eq.s32.totalorder %s19, 1
      %p152 = por %p150, %p151
      %p153 = scmp.ne.s32.totalorder %s142, %s143
      %p154 = scmp.eq.s32.totalorder %s19, 0
      %p155 = por %p153, %p154
      %p156 = scmp.ne.s32.totalorder %s142, %s143
      %p157 = scmp.eq.s32.totalorder %s20, 1
      %p158 = por %p156, %p157
      %p160 = scmp.ne.s32.totalorder %s143, %s159
      %p161 = scmp.eq.s32.totalorder %s20, 0
      %p162 = por %p160, %p161
      %p163 = scmp.le.s32.totalorder 1, %s14
      %p164 = scmp.lt.s32.totalorder %s14, 3
      %p165 = pnand %p163, %p164
      %p166 = pneg %p165
      // Predicated region
      $region9: #{tpu_custom_call.1} parent=5 // pred_check
        _
      $region10: #{tpu_custom_call.1} parent=5 // pred_check_branch
        %168 = sbr.rel (%p165) target = $region12
      $region11: #{tpu_custom_call.1} parent=5 // pred_region
        %s169 = ssub.s32 %s14, 1
        // Predicated region
        $region13: #{tpu_custom_call.1} parent=11 // pred_check
          %p170 = pneg %p87
        $region14: #{tpu_custom_call.1} parent=11 // pred_check_branch
          %172 = sbr.rel (%p170) target = $region16
        $region15: #{tpu_custom_call.1} parent=11 // pred_region
          _
        $region16: #{tpu_custom_call.1} parent=11 // pred_fallthru
          _
        // Predicated region
        $region17: #{tpu_custom_call.1} parent=11 // pred_check
          %p173 = pneg %p108
        $region18: #{tpu_custom_call.1} parent=11 // pred_check_branch
          %175 = sbr.rel (%p173) target = $region20
        $region19: #{tpu_custom_call.1} parent=11 // pred_region
          _
        $region20: #{tpu_custom_call.1} parent=11 // pred_fallthru
          _
        // Predicated region
        $region21: #{tpu_custom_call.1} parent=11 // pred_check
          %p176 = pneg %p129
        $region22: #{tpu_custom_call.1} parent=11 // pred_check_branch
          %178 = sbr.rel (%p176) target = $region24
        $region23: #{tpu_custom_call.1} parent=11 // pred_region
          _
        $region24: #{tpu_custom_call.1} parent=11 // pred_fallthru
          _
      $region12: #{tpu_custom_call.1} parent=5 // pred_fallthru
        _
      %p179 = scmp.lt.s32.totalorder %s14, 2
      // Predicated region
      $region25: #{tpu_custom_call.1} parent=5 // pred_check
        %p180 = pneg %p179
      $region26: #{tpu_custom_call.1} parent=5 // pred_check_branch
        %182 = sbr.rel (%p180) target = $region28
      $region27: #{tpu_custom_call.1} parent=5 // pred_region
        // Predicated region
        $region29: #{tpu_custom_call.1} parent=27 // pred_check
          %p183 = pneg %p34
        $region30: #{tpu_custom_call.1} parent=27 // pred_check_branch
          %185 = sbr.rel (%p183) target = $region32
        $region31: #{tpu_custom_call.1} parent=27 // pred_region
          %s186 = smul.u32 16, %s14
          %p187 = scmp.lt.s32.totalorder %s186, 31
          %s188 = scalar_select %p187, %s186, 31
          %s189 = smul.addr %s188, 8
          %s190 = scalar_lea.vmem %s0, %s189
          %s191 = smul.u32 16, %s14
        $region32: #{tpu_custom_call.1} parent=27 // pred_fallthru
          _
        // Predicated region
        $region33: #{tpu_custom_call.1} parent=27 // pred_check
          %p192 = pneg %p60
        $region34: #{tpu_custom_call.1} parent=27 // pred_check_branch
          %194 = sbr.rel (%p192) target = $region36
        $region35: #{tpu_custom_call.1} parent=27 // pred_region
          %p195 = scmp.lt.s32.totalorder %s14, 1
          %s196 = scalar_select %p195, %s14, 1
          %s197 = scalar_lea.vmem %s1, %s196
        $region36: #{tpu_custom_call.1} parent=27 // pred_fallthru
          _
      $region28: #{tpu_custom_call.1} parent=5 // pred_fallthru
        _
      %p198 = scmp.le.s32.totalorder 1, %s14
      %p199 = scmp.lt.s32.totalorder %s14, 3
      %p200 = pnand %p198, %p199
      %p201 = pneg %p200
      // Predicated region
      $region37: #{tpu_custom_call.1} parent=5 // pred_check
        _
      $region38: #{tpu_custom_call.1} parent=5 // pred_check_branch
        %203 = sbr.rel (%p200) target = $region40
      $region39: #{tpu_custom_call.1} parent=5 // pred_region
        %s204 = ssub.s32 %s14, 1
        %s205 = smul.u32 16, %s19
        %p206 = scmp.lt.s32.totalorder %s205, 31
        %s207 = scalar_select %p206, %s205, 31
        %s208 = smul.addr %s207, 8
        %s209 = scalar_lea.vmem %s0, %s208
        %p210 = pneg %p40
        %p211 = pneg %p37
        %p212 = scmp.lt.s32.totalorder %s19, 1
        %s213 = scalar_select %p212, %s19, 1
        %s214 = scalar_lea.vmem %s1, %s213
        %p215 = pneg %p66
        %p216 = pneg %p63
        %p217 = pneg %p87
        %p218 = pneg %p84
        %p219 = pneg %p108
        %p220 = pneg %p105
        %p221 = pneg %p129
        %p222 = pneg %p126
        %p223 = pneg %p155
        %p224 = pneg %p152
        %s225 = sand.u32 %s142, 1
        %s226 = scalar_lea.sflag [#allocation3], %s225
        %s227 = sand.u32 %s142, 1
        %s228 = scalar_lea.vmem [#allocation2], %s227
        %s229 = smul.u32 16, %s19
        %p230 = scmp.lt.s32.totalorder %s229, 31
        %s231 = scalar_select %p230, %s229, 31
        %s232 = smul.addr %s231, 8
        %s233 = scalar_lea.vmem %s0, %s232
        %s234 = smul.u32 16, %s19
        %p235 = scmp.lt.s32.totalorder %s19, 1
        %s236 = scalar_select %p235, %s19, 1
        %s237 = scalar_lea.vmem %s1, %s236
        %v239 = vlaneseq
        %v240 = vshrl.u32 %v239, 7
        %v241 = vadd.s32 %v240, 8
        %v242 = vadd.s32 %v240, 16
        %v243 = vadd.s32 %v240, 24
        %v244 = vadd.s32 %v240, 32
        %v245 = vadd.s32 %v240, 40
        %v246 = vadd.s32 %v240, 48
        %v247 = vadd.s32 %v240, 56
        %v248 = vadd.s32 %v240, 64
        %v249 = vadd.s32 %v240, 72
        %v250 = vadd.s32 %v240, 80
        %v251 = vadd.s32 %v240, 88
        %v252 = vadd.s32 %v240, 96
        %v253 = vadd.s32 %v240, 104
        %v254 = vadd.s32 %v240, 112
        %v255 = vadd.s32 %v240, 120
        %vm256 = vcmp.gt.s32.totalorder %v240, 0
        %vm257 = vcmp.gt.s32.totalorder %v241, 0
        %vm258 = vcmp.gt.s32.totalorder %v242, 0
        %vm259 = vcmp.gt.s32.totalorder %v243, 0
        %vm260 = vcmp.gt.s32.totalorder %v244, 0
        %vm261 = vcmp.gt.s32.totalorder %v245, 0
        %vm262 = vcmp.gt.s32.totalorder %v246, 0
        %vm263 = vcmp.gt.s32.totalorder %v247, 0
        %vm264 = vcmp.gt.s32.totalorder %v248, 0
        %vm265 = vcmp.gt.s32.totalorder %v249, 0
        %vm266 = vcmp.gt.s32.totalorder %v250, 0
        %vm267 = vcmp.gt.s32.totalorder %v251, 0
        %vm268 = vcmp.gt.s32.totalorder %v252, 0
        %vm269 = vcmp.gt.s32.totalorder %v253, 0
        %vm270 = vcmp.gt.s32.totalorder %v254, 0
        %vm271 = vcmp.gt.s32.totalorder %v255, 0
        %vm272 = vcmp.lt.s32.totalorder %v240, 127
        %vm273 = vcmp.lt.s32.totalorder %v241, 127
        %vm274 = vcmp.lt.s32.totalorder %v242, 127
        %vm275 = vcmp.lt.s32.totalorder %v243, 127
        %vm276 = vcmp.lt.s32.totalorder %v244, 127
        %vm277 = vcmp.lt.s32.totalorder %v245, 127
        %vm278 = vcmp.lt.s32.totalorder %v246, 127
        %vm279 = vcmp.lt.s32.totalorder %v247, 127
        %vm280 = vcmp.lt.s32.totalorder %v248, 127
        %vm281 = vcmp.lt.s32.totalorder %v249, 127
        %vm282 = vcmp.lt.s32.totalorder %v250, 127
        %vm283 = vcmp.lt.s32.totalorder %v251, 127
        %vm284 = vcmp.lt.s32.totalorder %v252, 127
        %vm285 = vcmp.lt.s32.totalorder %v253, 127
        %vm286 = vcmp.lt.s32.totalorder %v254, 127
        %vm287 = vcmp.lt.s32.totalorder %v255, 127
        %v288 = vld [vmem:[%s4] sm:$0xff]
        %v289 = vld [vmem:[%s233] sm:$0xff]
        %v290 = vld [vmem:[%s233 + $0x8] sm:$0xff]
        %v291 = vld [vmem:[%s233 + $0x10] sm:$0xff]
        %v292 = vld [vmem:[%s233 + $0x18] sm:$0xff]
        %v293 = vld [vmem:[%s233 + $0x20] sm:$0xff]
        %v294 = vld [vmem:[%s233 + $0x28] sm:$0xff]
        %v295 = vld [vmem:[%s233 + $0x30] sm:$0xff]
        %v296 = vld [vmem:[%s233 + $0x38] sm:$0xff]
        %v297 = vld [vmem:[%s233 + $0x40] sm:$0xff]
        %v298 = vld [vmem:[%s233 + $0x48] sm:$0xff]
        %v299 = vld [vmem:[%s233 + $0x50] sm:$0xff]
        %v300 = vld [vmem:[%s233 + $0x58] sm:$0xff]
        %v301 = vld [vmem:[%s233 + $0x60] sm:$0xff]
        %v302 = vld [vmem:[%s233 + $0x68] sm:$0xff]
        %v303 = vld [vmem:[%s233 + $0x70] sm:$0xff]
        %v304 = vld [vmem:[%s233 + $0x78] sm:$0xff]
        %v305 = vrot.slane %v289, 7
        %v306 = vrot.slane %v290, 7
        %v307 = vrot.slane %v291, 7
        %v308 = vrot.slane %v292, 7
        %v309 = vrot.slane %v293, 7
        %v310 = vrot.slane %v294, 7
        %v311 = vrot.slane %v295, 7
        %v312 = vrot.slane %v296, 7
        %v313 = vrot.slane %v297, 7
        %v314 = vrot.slane %v298, 7
        %v315 = vrot.slane %v299, 7
        %v316 = vrot.slane %v300, 7
        %v317 = vrot.slane %v301, 7
        %v318 = vrot.slane %v302, 7
        %v319 = vrot.slane %v303, 7
        %v320 = vrot.slane %v304, 7
        %vm321 = vcmp.lt.s32.totalorder %v240, 1
        %v322 = vsel %vm321, %v319, %v320
        %v323 = vsel %vm321, %v318, %v319
        %v324 = vsel %vm321, %v317, %v318
        %v325 = vsel %vm321, %v316, %v317
        %v326 = vsel %vm321, %v315, %v316
        %v327 = vsel %vm321, %v314, %v315
        %v328 = vsel %vm321, %v313, %v314
        %v329 = vsel %vm321, %v312, %v313
        %v330 = vsel %vm321, %v311, %v312
        %v331 = vsel %vm321, %v310, %v311
        %v332 = vsel %vm321, %v309, %v310
        %v333 = vsel %vm321, %v308, %v309
        %v334 = vsel %vm321, %v307, %v308
        %v335 = vsel %vm321, %v306, %v307
        %v336 = vsel %vm321, %v305, %v306
        %v337 = vsel %vm321, %v320, %v305
        %v338 = vrot.slane %v289, 1
        %v339 = vrot.slane %v290, 1
        %v340 = vrot.slane %v291, 1
        %v341 = vrot.slane %v292, 1
        %v342 = vrot.slane %v293, 1
        %v343 = vrot.slane %v294, 1
        %v344 = vrot.slane %v295, 1
        %v345 = vrot.slane %v296, 1
        %v346 = vrot.slane %v297, 1
        %v347 = vrot.slane %v298, 1
        %v348 = vrot.slane %v299, 1
        %v349 = vrot.slane %v300, 1
        %v350 = vrot.slane %v301, 1
        %v351 = vrot.slane %v302, 1
        %v352 = vrot.slane %v303, 1
        %v353 = vrot.slane %v304, 1
        %vm354 = vcmp.lt.s32.totalorder %v240, 7
        %v355 = vsel %vm354, %v352, %v353
        %v356 = vsel %vm354, %v351, %v352
        %v357 = vsel %vm354, %v350, %v351
        %v358 = vsel %vm354, %v349, %v350
        %v359 = vsel %vm354, %v348, %v349
        %v360 = vsel %vm354, %v347, %v348
        %v361 = vsel %vm354, %v346, %v347
        %v362 = vsel %vm354, %v345, %v346
        %v363 = vsel %vm354, %v344, %v345
        %v364 = vsel %vm354, %v343, %v344
        %v365 = vsel %vm354, %v342, %v343
        %v366 = vsel %vm354, %v341, %v342
        %v367 = vsel %vm354, %v340, %v341
        %v368 = vsel %vm354, %v339, %v340
        %v369 = vsel %vm354, %v338, %v339
        %v370 = vsel %vm354, %v353, %v338
        %v371 = vsel %vm256, 1, 0
        %v372 = vsel %vm257, 1, 0
        %v373 = vsel %vm258, 1, 0
        %v374 = vsel %vm259, 1, 0
        %v375 = vsel %vm260, 1, 0
        %v376 = vsel %vm261, 1, 0
        %v377 = vsel %vm262, 1, 0
        %v378 = vsel %vm263, 1, 0
        %v379 = vsel %vm264, 1, 0
        %v380 = vsel %vm265, 1, 0
        %v381 = vsel %vm266, 1, 0
        %v382 = vsel %vm267, 1, 0
        %v383 = vsel %vm268, 1, 0
        %v384 = vsel %vm269, 1, 0
        %v385 = vsel %vm270, 1, 0
        %v386 = vsel %vm271, 1, 0
        %vm387 = vcmp.eq.s32.totalorder %v371, 1
        %vm388 = vcmp.eq.s32.totalorder %v372, 1
        %vm389 = vcmp.eq.s32.totalorder %v373, 1
        %vm390 = vcmp.eq.s32.totalorder %v374, 1
        %vm391 = vcmp.eq.s32.totalorder %v375, 1
        %vm392 = vcmp.eq.s32.totalorder %v376, 1
        %vm393 = vcmp.eq.s32.totalorder %v377, 1
        %vm394 = vcmp.eq.s32.totalorder %v378, 1
        %vm395 = vcmp.eq.s32.totalorder %v379, 1
        %vm396 = vcmp.eq.s32.totalorder %v380, 1
        %vm397 = vcmp.eq.s32.totalorder %v381, 1
        %vm398 = vcmp.eq.s32.totalorder %v382, 1
        %vm399 = vcmp.eq.s32.totalorder %v383, 1
        %vm400 = vcmp.eq.s32.totalorder %v384, 1
        %vm401 = vcmp.eq.s32.totalorder %v385, 1
        %vm402 = vcmp.eq.s32.totalorder %v386, 1
        %v403 = vsel %vm387, %v337, 0.0
        %v404 = vsel %vm388, %v336, 0.0
        %v405 = vsel %vm389, %v335, 0.0
        %v406 = vsel %vm390, %v334, 0.0
        %v407 = vsel %vm391, %v333, 0.0
        %v408 = vsel %vm392, %v332, 0.0
        %v409 = vsel %vm393, %v331, 0.0
        %v410 = vsel %vm394, %v330, 0.0
        %v411 = vsel %vm395, %v329, 0.0
        %v412 = vsel %vm396, %v328, 0.0
        %v413 = vsel %vm397, %v327, 0.0
        %v414 = vsel %vm398, %v326, 0.0
        %v415 = vsel %vm399, %v325, 0.0
        %v416 = vsel %vm400, %v324, 0.0
        %v417 = vsel %vm401, %v323, 0.0
        %v418 = vsel %vm402, %v322, 0.0
        %v419 = vsel %vm272, 1, 0
        %v420 = vsel %vm273, 1, 0
        %v421 = vsel %vm274, 1, 0
        %v422 = vsel %vm275, 1, 0
        %v423 = vsel %vm276, 1, 0
        %v424 = vsel %vm277, 1, 0
        %v425 = vsel %vm278, 1, 0
        %v426 = vsel %vm279, 1, 0
        %v427 = vsel %vm280, 1, 0
        %v428 = vsel %vm281, 1, 0
        %v429 = vsel %vm282, 1, 0
        %v430 = vsel %vm283, 1, 0
        %v431 = vsel %vm284, 1, 0
        %v432 = vsel %vm285, 1, 0
        %v433 = vsel %vm286, 1, 0
        %v434 = vsel %vm287, 1, 0
        %vm435 = vcmp.eq.s32.totalorder %v419, 1
        %vm436 = vcmp.eq.s32.totalorder %v420, 1
        %vm437 = vcmp.eq.s32.totalorder %v421, 1
        %vm438 = vcmp.eq.s32.totalorder %v422, 1
        %vm439 = vcmp.eq.s32.totalorder %v423, 1
        %vm440 = vcmp.eq.s32.totalorder %v424, 1
        %vm441 = vcmp.eq.s32.totalorder %v425, 1
        %vm442 = vcmp.eq.s32.totalorder %v426, 1
        %vm443 = vcmp.eq.s32.totalorder %v427, 1
        %vm444 = vcmp.eq.s32.totalorder %v428, 1
        %vm445 = vcmp.eq.s32.totalorder %v429, 1
        %vm446 = vcmp.eq.s32.totalorder %v430, 1
        %vm447 = vcmp.eq.s32.totalorder %v431, 1
        %vm448 = vcmp.eq.s32.totalorder %v432, 1
        %vm449 = vcmp.eq.s32.totalorder %v433, 1
        %vm450 = vcmp.eq.s32.totalorder %v434, 1
        %v451 = vsel %vm435, %v369, 0.0
        %v452 = vsel %vm436, %v368, 0.0
        %v453 = vsel %vm437, %v367, 0.0
        %v454 = vsel %vm438, %v366, 0.0
        %v455 = vsel %vm439, %v365, 0.0
        %v456 = vsel %vm440, %v364, 0.0
        %v457 = vsel %vm441, %v363, 0.0
        %v458 = vsel %vm442, %v362, 0.0
        %v459 = vsel %vm443, %v361, 0.0
        %v460 = vsel %vm444, %v360, 0.0
        %v461 = vsel %vm445, %v359, 0.0
        %v462 = vsel %vm446, %v358, 0.0
        %v463 = vsel %vm447, %v357, 0.0
        %v464 = vsel %vm448, %v356, 0.0
        %v465 = vsel %vm449, %v355, 0.0
        %v466 = vsel %vm450, %v370, 0.0
        %v467 = vpack.c.bf16 %v404, %v403
        %v468 = vpack.c.bf16 %v406, %v405
        %v469 = vpack.c.bf16 %v408, %v407
        %v470 = vpack.c.bf16 %v410, %v409
        %v471 = vpack.c.bf16 %v412, %v411
        %v472 = vpack.c.bf16 %v414, %v413
        %v473 = vpack.c.bf16 %v416, %v415
        %v474 = vpack.c.bf16 %v418, %v417
        %v475 = vld [vmem:[%s2] sm:$0xf]
        %v476 = vld [vmem:[%s2 + $0x4] sm:$0xf]
        %v477 = vld [vmem:[%s2 + $0x8] sm:$0xf]
        %v478 = vld [vmem:[%s2 + $0xc] sm:$0xf]
        %v479 = vpack.c.bf16 %v290, %v289
        %v480 = vpack.c.bf16 %v292, %v291
        %v481 = vpack.c.bf16 %v294, %v293
        %v482 = vpack.c.bf16 %v296, %v295
        %v483 = vpack.c.bf16 %v298, %v297
        %v484 = vpack.c.bf16 %v300, %v299
        %v485 = vpack.c.bf16 %v302, %v301
        %v486 = vpack.c.bf16 %v304, %v303
        %s487 = scalar_lea.vmem %s2, 16
        %v488 = vld [vmem:[%s487] sm:$0xf]
        %v489 = vld [vmem:[%s487 + $0x4] sm:$0xf]
        %v490 = vld [vmem:[%s487 + $0x8] sm:$0xf]
        %v491 = vld [vmem:[%s487 + $0xc] sm:$0xf]
        %v496 = vunpack.c.l.b16 %v488
        %v497 = vunpack.c.l.b16 %v489
        %v498 = vunpack.c.l.b16 %v490
        %v499 = vunpack.c.l.b16 %v491
        %v500 = vpack.c.b16 %v497, %v496
        %v501 = vpack.c.b16 %v499, %v498
        %vm504 = vcmask 261120
        %v506 = vsel %vm504, %v479, 0
        %v509 = vsel %vm504, %v480, 0
        %v512 = vsel %vm504, %v481, 0
        %v515 = vsel %vm504, %v482, 0
        %v518 = vsel %vm504, %v483, 0
        %v521 = vsel %vm504, %v484, 0
        %v524 = vsel %vm504, %v485, 0
        %v527 = vsel %vm504, %v486, 0
        %529 = vmatprep.subr.bf16.mxu0 0
        %530 = vmatpush1.bf16.msra.mxu0 %v500
        %531 = vmatprep.subr.bf16.mxu0 0
        %532 = vmatpush1.bf16.msra.mxu0 %v501
        %533 = vmatprep.subr.bf16.mxu0 0
        %534 = vmatpush1.bf16.msra.mxu0 0
        %535 = vmatprep.subr.bf16.mxu0 0
        %536 = vmatpush1.bf16.msra.mxu0 0
        %537 = vmatprep.subr.bf16.mxu0 0
        %538 = vmatpush1.bf16.msra.mxu0 0
        %539 = vmatprep.subr.bf16.mxu0 0
        %540 = vmatpush1.bf16.msra.mxu0 0
        %541 = vmatprep.subr.bf16.mxu0 0
        %542 = vmatpush1.bf16.msra.mxu0 0
        %543 = vmatprep.subr.bf16.mxu0 0
        %544 = vmatpush1.bf16.msra.mxu0 0
        %545 = vmatprep.subr.bf16.mxu0 0
        %546 = vmatpush1.bf16.msra.mxu0 0
        %547 = vmatprep.subr.bf16.mxu0 0
        %548 = vmatpush1.bf16.msra.mxu0 0
        %549 = vmatprep.subr.bf16.mxu0 0
        %550 = vmatpush1.bf16.msra.mxu0 0
        %551 = vmatprep.subr.bf16.mxu0 0
        %552 = vmatpush1.bf16.msra.mxu0 0
        %553 = vmatprep.subr.bf16.mxu0 0
        %554 = vmatpush1.bf16.msra.mxu0 0
        %555 = vmatprep.subr.bf16.mxu0 0
        %556 = vmatpush1.bf16.msra.mxu0 0
        %557 = vmatprep.subr.bf16.mxu0 0
        %558 = vmatpush1.bf16.msra.mxu0 0
        %559 = vmatprep.subr.bf16.mxu0 0
        %560 = vmatpush1.bf16.msra.mxu0 0
        %561 = vmatprep.mubr.bf16.mxu0 0
        %562 = vmatmul.mubr.bf16.gmra.mrb[0].mxu0 %v506
        %v563 = vpop.f32.mrb[0].mxu0
        %v564 = vadd.f32 0.0, %v563
        %v565 = vpop.f32.mrb[0].mxu0
        %v566 = vpop.f32.mrb[0].mxu0
        %v567 = vadd.f32 0.0, %v566
        %v568 = vpop.f32.mrb[0].mxu0
        %569 = vmatprep.mubr.bf16.mxu0 0
        %570 = vmatmul.mubr.bf16.gmra.mrb[0].mxu0 %v509
        %v571 = vpop.f32.mrb[0].mxu0
        %v572 = vadd.f32 0.0, %v571
        %v573 = vpop.f32.mrb[0].mxu0
        %v574 = vpop.f32.mrb[0].mxu0
        %v575 = vadd.f32 0.0, %v574
        %v576 = vpop.f32.mrb[0].mxu0
        %577 = vmatprep.mubr.bf16.mxu0 0
        %578 = vmatmul.mubr.bf16.gmra.mrb[0].mxu0 %v512
        %v579 = vpop.f32.mrb[0].mxu0
        %v580 = vadd.f32 0.0, %v579
        %v581 = vpop.f32.mrb[0].mxu0
        %v582 = vpop.f32.mrb[0].mxu0
        %v583 = vadd.f32 0.0, %v582
        %v584 = vpop.f32.mrb[0].mxu0
        %585 = vmatprep.mubr.bf16.mxu0 0
        %586 = vmatmul.mubr.bf16.gmra.mrb[0].mxu0 %v515
        %v587 = vpop.f32.mrb[0].mxu0
        %v588 = vadd.f32 0.0, %v587
        %v589 = vpop.f32.mrb[0].mxu0
        %v590 = vpop.f32.mrb[0].mxu0
        %v591 = vadd.f32 0.0, %v590
        %v592 = vpop.f32.mrb[0].mxu0
        %593 = vmatprep.mubr.bf16.mxu0 0
        %594 = vmatmul.mubr.bf16.gmra.mrb[0].mxu0 %v518
        %v595 = vpop.f32.mrb[0].mxu0
        %v596 = vadd.f32 0.0, %v595
        %v597 = vpop.f32.mrb[0].mxu0
        %v598 = vpop.f32.mrb[0].mxu0
        %v599 = vadd.f32 0.0, %v598
        %v600 = vpop.f32.mrb[0].mxu0
        %601 = vmatprep.mubr.bf16.mxu0 0
        %602 = vmatmul.mubr.bf16.gmra.mrb[0].mxu0 %v521
        %v603 = vpop.f32.mrb[0].mxu0
        %v604 = vadd.f32 0.0, %v603
        %v605 = vpop.f32.mrb[0].mxu0
        %v606 = vpop.f32.mrb[0].mxu0
        %v607 = vadd.f32 0.0, %v606
        %v608 = vpop.f32.mrb[0].mxu0
        %609 = vmatprep.mubr.bf16.mxu0 0
        %610 = vmatmul.mubr.bf16.gmra.mrb[0].mxu0 %v524
        %v611 = vpop.f32.mrb[0].mxu0
        %v612 = vadd.f32 0.0, %v611
        %v613 = vpop.f32.mrb[0].mxu0
        %v614 = vpop.f32.mrb[0].mxu0
        %v615 = vadd.f32 0.0, %v614
        %v616 = vpop.f32.mrb[0].mxu0
        %617 = vmatprep.mubr.bf16.mxu0 0
        %618 = vmatmul.mubr.bf16.gmra.mrb[0].mxu0 %v527
        %v619 = vpop.f32.mrb[0].mxu0
        %v620 = vadd.f32 0.0, %v619
        %v621 = vpop.f32.mrb[0].mxu0
        %v622 = vpop.f32.mrb[0].mxu0
        %v623 = vadd.f32 0.0, %v622
        %v624 = vpop.f32.mrb[0].mxu0
        %625 = vdwg.mxu0
        %v630 = vunpack.c.l.b16 %v475
        %v631 = vunpack.c.l.b16 %v476
        %v632 = vunpack.c.l.b16 %v477
        %v633 = vunpack.c.l.b16 %v478
        %v634 = vpack.c.b16 %v631, %v630
        %v635 = vpack.c.b16 %v633, %v632
        %v639 = vsel %vm504, %v467, 0
        %v642 = vsel %vm504, %v468, 0
        %v645 = vsel %vm504, %v469, 0
        %v648 = vsel %vm504, %v470, 0
        %v651 = vsel %vm504, %v471, 0
        %v654 = vsel %vm504, %v472, 0
        %v657 = vsel %vm504, %v473, 0
        %v660 = vsel %vm504, %v474, 0
        %662 = vmatprep.subr.bf16.mxu0 0
        %663 = vmatpush1.bf16.msra.mxu0 %v634
        %664 = vmatprep.subr.bf16.mxu0 0
        %665 = vmatpush1.bf16.msra.mxu0 %v635
        %666 = vmatprep.subr.bf16.mxu0 0
        %667 = vmatpush1.bf16.msra.mxu0 0
        %668 = vmatprep.subr.bf16.mxu0 0
        %669 = vmatpush1.bf16.msra.mxu0 0
        %670 = vmatprep.subr.bf16.mxu0 0
        %671 = vmatpush1.bf16.msra.mxu0 0
        %672 = vmatprep.subr.bf16.mxu0 0
        %673 = vmatpush1.bf16.msra.mxu0 0
        %674 = vmatprep.subr.bf16.mxu0 0
        %675 = vmatpush1.bf16.msra.mxu0 0
        %676 = vmatprep.subr.bf16.mxu0 0
        %677 = vmatpush1.bf16.msra.mxu0 0
        %678 = vmatprep.subr.bf16.mxu0 0
        %679 = vmatpush1.bf16.msra.mxu0 0
        %680 = vmatprep.subr.bf16.mxu0 0
        %681 = vmatpush1.bf16.msra.mxu0 0
        %682 = vmatprep.subr.bf16.mxu0 0
        %683 = vmatpush1.bf16.msra.mxu0 0
        %684 = vmatprep.subr.bf16.mxu0 0
        %685 = vmatpush1.bf16.msra.mxu0 0
        %686 = vmatprep.subr.bf16.mxu0 0
        %687 = vmatpush1.bf16.msra.mxu0 0
        %688 = vmatprep.subr.bf16.mxu0 0
        %689 = vmatpush1.bf16.msra.mxu0 0
        %690 = vmatprep.subr.bf16.mxu0 0
        %691 = vmatpush1.bf16.msra.mxu0 0
        %692 = vmatprep.subr.bf16.mxu0 0
        %693 = vmatpush1.bf16.msra.mxu0 0
        %694 = vmatprep.mubr.bf16.mxu0 0
        %695 = vmatmul.mubr.bf16.gmra.mrb[0].mxu0 %v639
        %v696 = vpop.f32.mrb[0].mxu0
        %v697 = vadd.f32 %v564, %v696
        %v698 = vpop.f32.mrb[0].mxu0
        %v699 = vpop.f32.mrb[0].mxu0
        %v700 = vadd.f32 %v567, %v699
        %v701 = vpop.f32.mrb[0].mxu0
        %702 = vmatprep.mubr.bf16.mxu0 0
        %703 = vmatmul.mubr.bf16.gmra.mrb[0].mxu0 %v642
        %v704 = vpop.f32.mrb[0].mxu0
        %v705 = vadd.f32 %v572, %v704
        %v706 = vpop.f32.mrb[0].mxu0
        %v707 = vpop.f32.mrb[0].mxu0
        %v708 = vadd.f32 %v575, %v707
        %v709 = vpop.f32.mrb[0].mxu0
        %710 = vmatprep.mubr.bf16.mxu0 0
        %711 = vmatmul.mubr.bf16.gmra.mrb[0].mxu0 %v645
        %v712 = vpop.f32.mrb[0].mxu0
        %v713 = vadd.f32 %v580, %v712
        %v714 = vpop.f32.mrb[0].mxu0
        %v715 = vpop.f32.mrb[0].mxu0
        %v716 = vadd.f32 %v583, %v715
        %v717 = vpop.f32.mrb[0].mxu0
        %718 = vmatprep.mubr.bf16.mxu0 0
        %719 = vmatmul.mubr.bf16.gmra.mrb[0].mxu0 %v648
        %v720 = vpop.f32.mrb[0].mxu0
        %v721 = vadd.f32 %v588, %v720
        %v722 = vpop.f32.mrb[0].mxu0
        %v723 = vpop.f32.mrb[0].mxu0
        %v724 = vadd.f32 %v591, %v723
        %v725 = vpop.f32.mrb[0].mxu0
        %726 = vmatprep.mubr.bf16.mxu0 0
        %727 = vmatmul.mubr.bf16.gmra.mrb[0].mxu0 %v651
        %v728 = vpop.f32.mrb[0].mxu0
        %v729 = vadd.f32 %v596, %v728
        %v730 = vpop.f32.mrb[0].mxu0
        %v731 = vpop.f32.mrb[0].mxu0
        %v732 = vadd.f32 %v599, %v731
        %v733 = vpop.f32.mrb[0].mxu0
        %734 = vmatprep.mubr.bf16.mxu0 0
        %735 = vmatmul.mubr.bf16.gmra.mrb[0].mxu0 %v654
        %v736 = vpop.f32.mrb[0].mxu0
        %v737 = vadd.f32 %v604, %v736
        %v738 = vpop.f32.mrb[0].mxu0
        %v739 = vpop.f32.mrb[0].mxu0
        %v740 = vadd.f32 %v607, %v739
        %v741 = vpop.f32.mrb[0].mxu0
        %742 = vmatprep.mubr.bf16.mxu0 0
        %743 = vmatmul.mubr.bf16.gmra.mrb[0].mxu0 %v657
        %v744 = vpop.f32.mrb[0].mxu0
        %v745 = vadd.f32 %v612, %v744
        %v746 = vpop.f32.mrb[0].mxu0
        %v747 = vpop.f32.mrb[0].mxu0
        %v748 = vadd.f32 %v615, %v747
        %v749 = vpop.f32.mrb[0].mxu0
        %750 = vmatprep.mubr.bf16.mxu0 0
        %751 = vmatmul.mubr.bf16.gmra.mrb[0].mxu0 %v660
        %v752 = vpop.f32.mrb[0].mxu0
        %v753 = vadd.f32 %v620, %v752
        %v754 = vpop.f32.mrb[0].mxu0
        %v755 = vpop.f32.mrb[0].mxu0
        %v756 = vadd.f32 %v623, %v755
        %v757 = vpop.f32.mrb[0].mxu0
        %758 = vdwg.mxu0
        %v759 = vpack.c.bf16 %v452, %v451
        %v760 = vpack.c.bf16 %v454, %v453
        %v761 = vpack.c.bf16 %v456, %v455
        %v762 = vpack.c.bf16 %v458, %v457
        %v763 = vpack.c.bf16 %v460, %v459
        %v764 = vpack.c.bf16 %v462, %v461
        %v765 = vpack.c.bf16 %v464, %v463
        %v766 = vpack.c.bf16 %v466, %v465
        %s767 = scalar_lea.vmem %s2, 32
        %v768 = vld [vmem:[%s767] sm:$0xf]
        %v769 = vld [vmem:[%s767 + $0x4] sm:$0xf]
        %v770 = vld [vmem:[%s767 + $0x8] sm:$0xf]
        %v771 = vld [vmem:[%s767 + $0xc] sm:$0xf]
        %v776 = vunpack.c.l.b16 %v768
        %v777 = vunpack.c.l.b16 %v769
        %v778 = vunpack.c.l.b16 %v770
        %v779 = vunpack.c.l.b16 %v771
        %v780 = vpack.c.b16 %v777, %v776
        %v781 = vpack.c.b16 %v779, %v778
        %v785 = vsel %vm504, %v759, 0
        %v788 = vsel %vm504, %v760, 0
        %v791 = vsel %vm504, %v761, 0
        %v794 = vsel %vm504, %v762, 0
        %v797 = vsel %vm504, %v763, 0
        %v800 = vsel %vm504, %v764, 0
        %v803 = vsel %vm504, %v765, 0
        %v806 = vsel %vm504, %v766, 0
        %808 = vmatprep.subr.bf16.mxu0 0
        %809 = vmatpush1.bf16.msra.mxu0 %v780
        %810 = vmatprep.subr.bf16.mxu0 0
        %811 = vmatpush1.bf16.msra.mxu0 %v781
        %812 = vmatprep.subr.bf16.mxu0 0
        %813 = vmatpush1.bf16.msra.mxu0 0
        %814 = vmatprep.subr.bf16.mxu0 0
        %815 = vmatpush1.bf16.msra.mxu0 0
        %816 = vmatprep.subr.bf16.mxu0 0
        %817 = vmatpush1.bf16.msra.mxu0 0
        %818 = vmatprep.subr.bf16.mxu0 0
        %819 = vmatpush1.bf16.msra.mxu0 0
        %820 = vmatprep.subr.bf16.mxu0 0
        %821 = vmatpush1.bf16.msra.mxu0 0
        %822 = vmatprep.subr.bf16.mxu0 0
        %823 = vmatpush1.bf16.msra.mxu0 0
        %824 = vmatprep.subr.bf16.mxu0 0
        %825 = vmatpush1.bf16.msra.mxu0 0
        %826 = vmatprep.subr.bf16.mxu0 0
        %827 = vmatpush1.bf16.msra.mxu0 0
        %828 = vmatprep.subr.bf16.mxu0 0
        %829 = vmatpush1.bf16.msra.mxu0 0
        %830 = vmatprep.subr.bf16.mxu0 0
        %831 = vmatpush1.bf16.msra.mxu0 0
        %832 = vmatprep.subr.bf16.mxu0 0
        %833 = vmatpush1.bf16.msra.mxu0 0
        %834 = vmatprep.subr.bf16.mxu0 0
        %835 = vmatpush1.bf16.msra.mxu0 0
        %836 = vmatprep.subr.bf16.mxu0 0
        %837 = vmatpush1.bf16.msra.mxu0 0
        %838 = vmatprep.subr.bf16.mxu0 0
        %839 = vmatpush1.bf16.msra.mxu0 0
        %840 = vmatprep.mubr.bf16.mxu0 0
        %841 = vmatmul.mubr.bf16.gmra.mrb[0].mxu0 %v785
        %v842 = vpop.f32.mrb[0].mxu0
        %v843 = vadd.f32 0.0, %v842
        %v844 = vpop.f32.mrb[0].mxu0
        %v845 = vpop.f32.mrb[0].mxu0
        %v846 = vadd.f32 0.0, %v845
        %v847 = vpop.f32.mrb[0].mxu0
        %848 = vmatprep.mubr.bf16.mxu0 0
        %849 = vmatmul.mubr.bf16.gmra.mrb[0].mxu0 %v788
        %v850 = vpop.f32.mrb[0].mxu0
        %v851 = vadd.f32 0.0, %v850
        %v852 = vpop.f32.mrb[0].mxu0
        %v853 = vpop.f32.mrb[0].mxu0
        %v854 = vadd.f32 0.0, %v853
        %v855 = vpop.f32.mrb[0].mxu0
        %856 = vmatprep.mubr.bf16.mxu0 0
        %857 = vmatmul.mubr.bf16.gmra.mrb[0].mxu0 %v791
        %v858 = vpop.f32.mrb[0].mxu0
        %v859 = vadd.f32 0.0, %v858
        %v860 = vpop.f32.mrb[0].mxu0
        %v861 = vpop.f32.mrb[0].mxu0
        %v862 = vadd.f32 0.0, %v861
        %v863 = vpop.f32.mrb[0].mxu0
        %864 = vmatprep.mubr.bf16.mxu0 0
        %865 = vmatmul.mubr.bf16.gmra.mrb[0].mxu0 %v794
        %v866 = vpop.f32.mrb[0].mxu0
        %v867 = vadd.f32 0.0, %v866
        %v868 = vpop.f32.mrb[0].mxu0
        %v869 = vpop.f32.mrb[0].mxu0
        %v870 = vadd.f32 0.0, %v869
        %v871 = vpop.f32.mrb[0].mxu0
        %872 = vmatprep.mubr.bf16.mxu0 0
        %873 = vmatmul.mubr.bf16.gmra.mrb[0].mxu0 %v797
        %v874 = vpop.f32.mrb[0].mxu0
        %v875 = vadd.f32 0.0, %v874
        %v876 = vpop.f32.mrb[0].mxu0
        %v877 = vpop.f32.mrb[0].mxu0
        %v878 = vadd.f32 0.0, %v877
        %v879 = vpop.f32.mrb[0].mxu0
        %880 = vmatprep.mubr.bf16.mxu0 0
        %881 = vmatmul.mubr.bf16.gmra.mrb[0].mxu0 %v800
        %v882 = vpop.f32.mrb[0].mxu0
        %v883 = vadd.f32 0.0, %v882
        %v884 = vpop.f32.mrb[0].mxu0
        %v885 = vpop.f32.mrb[0].mxu0
        %v886 = vadd.f32 0.0, %v885
        %v887 = vpop.f32.mrb[0].mxu0
        %888 = vmatprep.mubr.bf16.mxu0 0
        %889 = vmatmul.mubr.bf16.gmra.mrb[0].mxu0 %v803
        %v890 = vpop.f32.mrb[0].mxu0
        %v891 = vadd.f32 0.0, %v890
        %v892 = vpop.f32.mrb[0].mxu0
        %v893 = vpop.f32.mrb[0].mxu0
        %v894 = vadd.f32 0.0, %v893
        %v895 = vpop.f32.mrb[0].mxu0
        %896 = vmatprep.mubr.bf16.mxu0 0
        %897 = vmatmul.mubr.bf16.gmra.mrb[0].mxu0 %v806
        %v898 = vpop.f32.mrb[0].mxu0
        %v899 = vadd.f32 0.0, %v898
        %v900 = vpop.f32.mrb[0].mxu0
        %v901 = vpop.f32.mrb[0].mxu0
        %v902 = vadd.f32 0.0, %v901
        %v903 = vpop.f32.mrb[0].mxu0
        %904 = vdwg.mxu0
        %v905 = vadd.f32 %v697, %v843
        %v906 = vadd.f32 %v700, %v846
        %v907 = vadd.f32 %v705, %v851
        %v908 = vadd.f32 %v708, %v854
        %v909 = vadd.f32 %v713, %v859
        %v910 = vadd.f32 %v716, %v862
        %v911 = vadd.f32 %v721, %v867
        %v912 = vadd.f32 %v724, %v870
        %v913 = vadd.f32 %v729, %v875
        %v914 = vadd.f32 %v732, %v878
        %v915 = vadd.f32 %v737, %v883
        %v916 = vadd.f32 %v740, %v886
        %v917 = vadd.f32 %v745, %v891
        %v918 = vadd.f32 %v748, %v894
        %v919 = vadd.f32 %v753, %v899
        %v920 = vadd.f32 %v756, %v902
        %v921 = vlaneseq
        %v922 = vshrl.u32 %v921, 7
        %v923 = vsub.s32 0, %v922
        %v924 = vrot.slane %v288, %v923
        %v925 = vadd.f32 %v905, %v924
        %v926 = vadd.f32 %v906, %v924
        %v927 = vadd.f32 %v907, %v924
        %v928 = vadd.f32 %v908, %v924
        %v929 = vadd.f32 %v909, %v924
        %v930 = vadd.f32 %v910, %v924
        %v931 = vadd.f32 %v911, %v924
        %v932 = vadd.f32 %v912, %v924
        %v933 = vadd.f32 %v913, %v924
        %v934 = vadd.f32 %v914, %v924
        %v935 = vadd.f32 %v915, %v924
        %v936 = vadd.f32 %v916, %v924
        %v937 = vadd.f32 %v917, %v924
        %v938 = vadd.f32 %v918, %v924
        %v939 = vadd.f32 %v919, %v924
        %v940 = vadd.f32 %v920, %v924
        %v941 = vmax.f32 %v925, 0.0
        %v942 = vmax.f32 %v926, 0.0
        %v943 = vmax.f32 %v927, 0.0
        %v944 = vmax.f32 %v928, 0.0
        %v945 = vmax.f32 %v929, 0.0
        %v946 = vmax.f32 %v930, 0.0
        %v947 = vmax.f32 %v931, 0.0
        %v948 = vmax.f32 %v932, 0.0
        %v949 = vmax.f32 %v933, 0.0
        %v950 = vmax.f32 %v934, 0.0
        %v951 = vmax.f32 %v935, 0.0
        %v952 = vmax.f32 %v936, 0.0
        %v953 = vmax.f32 %v937, 0.0
        %v954 = vmax.f32 %v938, 0.0
        %v955 = vmax.f32 %v939, 0.0
        %v956 = vmax.f32 %v940, 0.0
        %v957 = vsel %vm504, %v941, 0.0
        %958 = vadd.xlane.f32.xlu0 %v957
        %v959 = vpop.xlane.xlu0 %958
        %v960 = vsel %vm504, %v942, 0.0
        %961 = vadd.xlane.f32.xlu0 %v960
        %v962 = vpop.xlane.xlu0 %961
        %v963 = vsel %vm504, %v943, 0.0
        %964 = vadd.xlane.f32.xlu0 %v963
        %v965 = vpop.xlane.xlu0 %964
        %v966 = vsel %vm504, %v944, 0.0
        %967 = vadd.xlane.f32.xlu0 %v966
        %v968 = vpop.xlane.xlu0 %967
        %v969 = vsel %vm504, %v945, 0.0
        %970 = vadd.xlane.f32.xlu0 %v969
        %v971 = vpop.xlane.xlu0 %970
        %v972 = vsel %vm504, %v946, 0.0
        %973 = vadd.xlane.f32.xlu0 %v972
        %v974 = vpop.xlane.xlu0 %973
        %v975 = vsel %vm504, %v947, 0.0
        %976 = vadd.xlane.f32.xlu0 %v975
        %v977 = vpop.xlane.xlu0 %976
        %v978 = vsel %vm504, %v948, 0.0
        %979 = vadd.xlane.f32.xlu0 %v978
        %v980 = vpop.xlane.xlu0 %979
        %v981 = vsel %vm504, %v949, 0.0
        %982 = vadd.xlane.f32.xlu0 %v981
        %v983 = vpop.xlane.xlu0 %982
        %v984 = vsel %vm504, %v950, 0.0
        %985 = vadd.xlane.f32.xlu0 %v984
        %v986 = vpop.xlane.xlu0 %985
        %v987 = vsel %vm504, %v951, 0.0
        %988 = vadd.xlane.f32.xlu0 %v987
        %v989 = vpop.xlane.xlu0 %988
        %v990 = vsel %vm504, %v952, 0.0
        %991 = vadd.xlane.f32.xlu0 %v990
        %v992 = vpop.xlane.xlu0 %991
        %v993 = vsel %vm504, %v953, 0.0
        %994 = vadd.xlane.f32.xlu0 %v993
        %v995 = vpop.xlane.xlu0 %994
        %v996 = vsel %vm504, %v954, 0.0
        %997 = vadd.xlane.f32.xlu0 %v996
        %v998 = vpop.xlane.xlu0 %997
        %v999 = vsel %vm504, %v955, 0.0
        %1000 = vadd.xlane.f32.xlu0 %v999
        %v1001 = vpop.xlane.xlu0 %1000
        %v1002 = vsel %vm504, %v956, 0.0
        %1003 = vadd.xlane.f32.xlu0 %v1002
        %v1004 = vpop.xlane.xlu0 %1003
        %v1005 = vmul.f32 %v959, 0.03125
        %v1006 = vmul.f32 %v962, 0.03125
        %v1007 = vmul.f32 %v965, 0.03125
        %v1008 = vmul.f32 %v968, 0.03125
        %v1009 = vmul.f32 %v971, 0.03125
        %v1010 = vmul.f32 %v974, 0.03125
        %v1011 = vmul.f32 %v977, 0.03125
        %v1012 = vmul.f32 %v980, 0.03125
        %v1013 = vmul.f32 %v983, 0.03125
        %v1014 = vmul.f32 %v986, 0.03125
        %v1015 = vmul.f32 %v989, 0.03125
        %v1016 = vmul.f32 %v992, 0.03125
        %v1017 = vmul.f32 %v995, 0.03125
        %v1018 = vmul.f32 %v998, 0.03125
        %v1019 = vmul.f32 %v1001, 0.03125
        %v1020 = vmul.f32 %v1004, 0.03125
        %v1021 = vmul.f32 %v941, %v941
        %v1022 = vmul.f32 %v942, %v942
        %v1023 = vmul.f32 %v943, %v943
        %v1024 = vmul.f32 %v944, %v944
        %v1025 = vmul.f32 %v945, %v945
        %v1026 = vmul.f32 %v946, %v946
        %v1027 = vmul.f32 %v947, %v947
        %v1028 = vmul.f32 %v948, %v948
        %v1029 = vmul.f32 %v949, %v949
        %v1030 = vmul.f32 %v950, %v950
        %v1031 = vmul.f32 %v951, %v951
        %v1032 = vmul.f32 %v952, %v952
        %v1033 = vmul.f32 %v953, %v953
        %v1034 = vmul.f32 %v954, %v954
        %v1035 = vmul.f32 %v955, %v955
        %v1036 = vmul.f32 %v956, %v956
        %v1037 = vsel %vm504, %v1021, 0.0
        %1038 = vadd.xlane.f32.xlu0 %v1037
        %v1039 = vpop.xlane.xlu0 %1038
        %v1040 = vsel %vm504, %v1022, 0.0
        %1041 = vadd.xlane.f32.xlu0 %v1040
        %v1042 = vpop.xlane.xlu0 %1041
        %v1043 = vsel %vm504, %v1023, 0.0
        %1044 = vadd.xlane.f32.xlu0 %v1043
        %v1045 = vpop.xlane.xlu0 %1044
        %v1046 = vsel %vm504, %v1024, 0.0
        %1047 = vadd.xlane.f32.xlu0 %v1046
        %v1048 = vpop.xlane.xlu0 %1047
        %v1049 = vsel %vm504, %v1025, 0.0
        %1050 = vadd.xlane.f32.xlu0 %v1049
        %v1051 = vpop.xlane.xlu0 %1050
        %v1052 = vsel %vm504, %v1026, 0.0
        %1053 = vadd.xlane.f32.xlu0 %v1052
        %v1054 = vpop.xlane.xlu0 %1053
        %v1055 = vsel %vm504, %v1027, 0.0
        %1056 = vadd.xlane.f32.xlu0 %v1055
        %v1057 = vpop.xlane.xlu0 %1056
        %v1058 = vsel %vm504, %v1028, 0.0
        %1059 = vadd.xlane.f32.xlu0 %v1058
        %v1060 = vpop.xlane.xlu0 %1059
        %v1061 = vsel %vm504, %v1029, 0.0
        %1062 = vadd.xlane.f32.xlu0 %v1061
        %v1063 = vpop.xlane.xlu0 %1062
        %v1064 = vsel %vm504, %v1030, 0.0
        %1065 = vadd.xlane.f32.xlu0 %v1064
        %v1066 = vpop.xlane.xlu0 %1065
        %v1067 = vsel %vm504, %v1031, 0.0
        %1068 = vadd.xlane.f32.xlu0 %v1067
        %v1069 = vpop.xlane.xlu0 %1068
        %v1070 = vsel %vm504, %v1032, 0.0
        %1071 = vadd.xlane.f32.xlu0 %v1070
        %v1072 = vpop.xlane.xlu0 %1071
        %v1073 = vsel %vm504, %v1033, 0.0
        %1074 = vadd.xlane.f32.xlu0 %v1073
        %v1075 = vpop.xlane.xlu0 %1074
        %v1076 = vsel %vm504, %v1034, 0.0
        %1077 = vadd.xlane.f32.xlu0 %v1076
        %v1078 = vpop.xlane.xlu0 %1077
        %v1079 = vsel %vm504, %v1035, 0.0
        %1080 = vadd.xlane.f32.xlu0 %v1079
        %v1081 = vpop.xlane.xlu0 %1080
        %v1082 = vsel %vm504, %v1036, 0.0
        %1083 = vadd.xlane.f32.xlu0 %v1082
        %v1084 = vpop.xlane.xlu0 %1083
        %v1085 = vmul.f32 %v1039, 0.03125
        %v1086 = vmul.f32 %v1042, 0.03125
        %v1087 = vmul.f32 %v1045, 0.03125
        %v1088 = vmul.f32 %v1048, 0.03125
        %v1089 = vmul.f32 %v1051, 0.03125
        %v1090 = vmul.f32 %v1054, 0.03125
        %v1091 = vmul.f32 %v1057, 0.03125
        %v1092 = vmul.f32 %v1060, 0.03125
        %v1093 = vmul.f32 %v1063, 0.03125
        %v1094 = vmul.f32 %v1066, 0.03125
        %v1095 = vmul.f32 %v1069, 0.03125
        %v1096 = vmul.f32 %v1072, 0.03125
        %v1097 = vmul.f32 %v1075, 0.03125
        %v1098 = vmul.f32 %v1078, 0.03125
        %v1099 = vmul.f32 %v1081, 0.03125
        %v1100 = vmul.f32 %v1084, 0.03125
        %v1101 = vmul.f32 %v1005, %v1005
        %v1102 = vmul.f32 %v1006, %v1006
        %v1103 = vmul.f32 %v1007, %v1007
        %v1104 = vmul.f32 %v1008, %v1008
        %v1105 = vmul.f32 %v1009, %v1009
        %v1106 = vmul.f32 %v1010, %v1010
        %v1107 = vmul.f32 %v1011, %v1011
        %v1108 = vmul.f32 %v1012, %v1012
        %v1109 = vmul.f32 %v1013, %v1013
        %v1110 = vmul.f32 %v1014, %v1014
        %v1111 = vmul.f32 %v1015, %v1015
        %v1112 = vmul.f32 %v1016, %v1016
        %v1113 = vmul.f32 %v1017, %v1017
        %v1114 = vmul.f32 %v1018, %v1018
        %v1115 = vmul.f32 %v1019, %v1019
        %v1116 = vmul.f32 %v1020, %v1020
        %v1117 = vsub.f32 %v1085, %v1101
        %v1118 = vsub.f32 %v1086, %v1102
        %v1119 = vsub.f32 %v1087, %v1103
        %v1120 = vsub.f32 %v1088, %v1104
        %v1121 = vsub.f32 %v1089, %v1105
        %v1122 = vsub.f32 %v1090, %v1106
        %v1123 = vsub.f32 %v1091, %v1107
        %v1124 = vsub.f32 %v1092, %v1108
        %v1125 = vsub.f32 %v1093, %v1109
        %v1126 = vsub.f32 %v1094, %v1110
        %v1127 = vsub.f32 %v1095, %v1111
        %v1128 = vsub.f32 %v1096, %v1112
        %v1129 = vsub.f32 %v1097, %v1113
        %v1130 = vsub.f32 %v1098, %v1114
        %v1131 = vsub.f32 %v1099, %v1115
        %v1132 = vsub.f32 %v1100, %v1116
        %v1133 = vsub.f32 %v941, %v1005
        %v1134 = vsub.f32 %v942, %v1006
        %v1135 = vsub.f32 %v943, %v1007
        %v1136 = vsub.f32 %v944, %v1008
        %v1137 = vsub.f32 %v945, %v1009
        %v1138 = vsub.f32 %v946, %v1010
        %v1139 = vsub.f32 %v947, %v1011
        %v1140 = vsub.f32 %v948, %v1012
        %v1141 = vsub.f32 %v949, %v1013
        %v1142 = vsub.f32 %v950, %v1014
        %v1143 = vsub.f32 %v951, %v1015
        %v1144 = vsub.f32 %v952, %v1016
        %v1145 = vsub.f32 %v953, %v1017
        %v1146 = vsub.f32 %v954, %v1018
        %v1147 = vsub.f32 %v955, %v1019
        %v1148 = vsub.f32 %v956, %v1020
        %v1149 = vadd.f32 %v1117, 1e-05
        %v1150 = vadd.f32 %v1118, 1e-05
        %v1151 = vadd.f32 %v1119, 1e-05
        %v1152 = vadd.f32 %v1120, 1e-05
        %v1153 = vadd.f32 %v1121, 1e-05
        %v1154 = vadd.f32 %v1122, 1e-05
        %v1155 = vadd.f32 %v1123, 1e-05
        %v1156 = vadd.f32 %v1124, 1e-05
        %v1157 = vadd.f32 %v1125, 1e-05
        %v1158 = vadd.f32 %v1126, 1e-05
        %v1159 = vadd.f32 %v1127, 1e-05
        %v1160 = vadd.f32 %v1128, 1e-05
        %v1161 = vadd.f32 %v1129, 1e-05
        %v1162 = vadd.f32 %v1130, 1e-05
        %v1163 = vadd.f32 %v1131, 1e-05
        %v1164 = vadd.f32 %v1132, 1e-05
        %v1165 = vrsqrt.pop %v1149
        %v1166 = vrsqrt.pop %v1150
        %v1167 = vrsqrt.pop %v1151
        %v1168 = vrsqrt.pop %v1152
        %v1169 = vrsqrt.pop %v1153
        %v1170 = vrsqrt.pop %v1154
        %v1171 = vrsqrt.pop %v1155
        %v1172 = vrsqrt.pop %v1156
        %v1173 = vrsqrt.pop %v1157
        %v1174 = vrsqrt.pop %v1158
        %v1175 = vrsqrt.pop %v1159
        %v1176 = vrsqrt.pop %v1160
        %v1177 = vrsqrt.pop %v1161
        %v1178 = vrsqrt.pop %v1162
        %v1179 = vrsqrt.pop %v1163
        %v1180 = vrsqrt.pop %v1164
        %v1181 = vmul.f32 %v1133, %v1165
        %v1182 = vmul.f32 %v1134, %v1166
        %v1183 = vmul.f32 %v1135, %v1167
        %v1184 = vmul.f32 %v1136, %v1168
        %v1185 = vmul.f32 %v1137, %v1169
        %v1186 = vmul.f32 %v1138, %v1170
        %v1187 = vmul.f32 %v1139, %v1171
        %v1188 = vmul.f32 %v1140, %v1172
        %v1189 = vmul.f32 %v1141, %v1173
        %v1190 = vmul.f32 %v1142, %v1174
        %v1191 = vmul.f32 %v1143, %v1175
        %v1192 = vmul.f32 %v1144, %v1176
        %v1193 = vmul.f32 %v1145, %v1177
        %v1194 = vmul.f32 %v1146, %v1178
        %v1195 = vmul.f32 %v1147, %v1179
        %v1196 = vmul.f32 %v1148, %v1180
        %v1197 = vlaneseq
        %v1198 = vshrl.u32 %v1197, 7
        %v1199 = vsub.s32 1, %v1198
        %v1200 = vrot.slane %v288, %v1199
        %v1201 = vmul.f32 %v1181, %v1200
        %v1202 = vmul.f32 %v1182, %v1200
        %v1203 = vmul.f32 %v1183, %v1200
        %v1204 = vmul.f32 %v1184, %v1200
        %v1205 = vmul.f32 %v1185, %v1200
        %v1206 = vmul.f32 %v1186, %v1200
        %v1207 = vmul.f32 %v1187, %v1200
        %v1208 = vmul.f32 %v1188, %v1200
        %v1209 = vmul.f32 %v1189, %v1200
        %v1210 = vmul.f32 %v1190, %v1200
        %v1211 = vmul.f32 %v1191, %v1200
        %v1212 = vmul.f32 %v1192, %v1200
        %v1213 = vmul.f32 %v1193, %v1200
        %v1214 = vmul.f32 %v1194, %v1200
        %v1215 = vmul.f32 %v1195, %v1200
        %v1216 = vmul.f32 %v1196, %v1200
        %v1217 = vlaneseq
        %v1218 = vshrl.u32 %v1217, 7
        %v1219 = vsub.s32 2, %v1218
        %v1220 = vrot.slane %v288, %v1219
        %v1221 = vadd.f32 %v1201, %v1220
        %v1222 = vadd.f32 %v1202, %v1220
        %v1223 = vadd.f32 %v1203, %v1220
        %v1224 = vadd.f32 %v1204, %v1220
        %v1225 = vadd.f32 %v1205, %v1220
        %v1226 = vadd.f32 %v1206, %v1220
        %v1227 = vadd.f32 %v1207, %v1220
        %v1228 = vadd.f32 %v1208, %v1220
        %v1229 = vadd.f32 %v1209, %v1220
        %v1230 = vadd.f32 %v1210, %v1220
        %v1231 = vadd.f32 %v1211, %v1220
        %v1232 = vadd.f32 %v1212, %v1220
        %v1233 = vadd.f32 %v1213, %v1220
        %v1234 = vadd.f32 %v1214, %v1220
        %v1235 = vadd.f32 %v1215, %v1220
        %v1236 = vadd.f32 %v1216, %v1220
        %v1237 = vrot.slane %v1221, 7
        %v1238 = vrot.slane %v1222, 7
        %v1239 = vrot.slane %v1223, 7
        %v1240 = vrot.slane %v1224, 7
        %v1241 = vrot.slane %v1225, 7
        %v1242 = vrot.slane %v1226, 7
        %v1243 = vrot.slane %v1227, 7
        %v1244 = vrot.slane %v1228, 7
        %v1245 = vrot.slane %v1229, 7
        %v1246 = vrot.slane %v1230, 7
        %v1247 = vrot.slane %v1231, 7
        %v1248 = vrot.slane %v1232, 7
        %v1249 = vrot.slane %v1233, 7
        %v1250 = vrot.slane %v1234, 7
        %v1251 = vrot.slane %v1235, 7
        %v1252 = vrot.slane %v1236, 7
        %v1253 = vsel %vm321, %v1251, %v1252
        %v1254 = vsel %vm321, %v1250, %v1251
        %v1255 = vsel %vm321, %v1249, %v1250
        %v1256 = vsel %vm321, %v1248, %v1249
        %v1257 = vsel %vm321, %v1247, %v1248
        %v1258 = vsel %vm321, %v1246, %v1247
        %v1259 = vsel %vm321, %v1245, %v1246
        %v1260 = vsel %vm321, %v1244, %v1245
        %v1261 = vsel %vm321, %v1243, %v1244
        %v1262 = vsel %vm321, %v1242, %v1243
        %v1263 = vsel %vm321, %v1241, %v1242
        %v1264 = vsel %vm321, %v1240, %v1241
        %v1265 = vsel %vm321, %v1239, %v1240
        %v1266 = vsel %vm321, %v1238, %v1239
        %v1267 = vsel %vm321, %v1237, %v1238
        %v1268 = vsel %vm321, %v1252, %v1237
        %v1269 = vrot.slane %v1221, 1
        %v1270 = vrot.slane %v1222, 1
        %v1271 = vrot.slane %v1223, 1
        %v1272 = vrot.slane %v1224, 1
        %v1273 = vrot.slane %v1225, 1
        %v1274 = vrot.slane %v1226, 1
        %v1275 = vrot.slane %v1227, 1
        %v1276 = vrot.slane %v1228, 1
        %v1277 = vrot.slane %v1229, 1
        %v1278 = vrot.slane %v1230, 1
        %v1279 = vrot.slane %v1231, 1
        %v1280 = vrot.slane %v1232, 1
        %v1281 = vrot.slane %v1233, 1
        %v1282 = vrot.slane %v1234, 1
        %v1283 = vrot.slane %v1235, 1
        %v1284 = vrot.slane %v1236, 1
        %v1285 = vsel %vm354, %v1283, %v1284
        %v1286 = vsel %vm354, %v1282, %v1283
        %v1287 = vsel %vm354, %v1281, %v1282
        %v1288 = vsel %vm354, %v1280, %v1281
        %v1289 = vsel %vm354, %v1279, %v1280
        %v1290 = vsel %vm354, %v1278, %v1279
        %v1291 = vsel %vm354, %v1277, %v1278
        %v1292 = vsel %vm354, %v1276, %v1277
        %v1293 = vsel %vm354, %v1275, %v1276
        %v1294 = vsel %vm354, %v1274, %v1275
        %v1295 = vsel %vm354, %v1273, %v1274
        %v1296 = vsel %vm354, %v1272, %v1273
        %v1297 = vsel %vm354, %v1271, %v1272
        %v1298 = vsel %vm354, %v1270, %v1271
        %v1299 = vsel %vm354, %v1269, %v1270
        %v1300 = vsel %vm354, %v1284, %v1269
        %v1301 = vsel %vm387, %v1268, 0.0
        %v1302 = vsel %vm388, %v1267, 0.0
        %v1303 = vsel %vm389, %v1266, 0.0
        %v1304 = vsel %vm390, %v1265, 0.0
        %v1305 = vsel %vm391, %v1264, 0.0
        %v1306 = vsel %vm392, %v1263, 0.0
        %v1307 = vsel %vm393, %v1262, 0.0
        %v1308 = vsel %vm394, %v1261, 0.0
        %v1309 = vsel %vm395, %v1260, 0.0
        %v1310 = vsel %vm396, %v1259, 0.0
        %v1311 = vsel %vm397, %v1258, 0.0
        %v1312 = vsel %vm398, %v1257, 0.0
        %v1313 = vsel %vm399, %v1256, 0.0
        %v1314 = vsel %vm400, %v1255, 0.0
        %v1315 = vsel %vm401, %v1254, 0.0
        %v1316 = vsel %vm402, %v1253, 0.0
        %v1317 = vsel %vm435, %v1299, 0.0
        %v1318 = vsel %vm436, %v1298, 0.0
        %v1319 = vsel %vm437, %v1297, 0.0
        %v1320 = vsel %vm438, %v1296, 0.0
        %v1321 = vsel %vm439, %v1295, 0.0
        %v1322 = vsel %vm440, %v1294, 0.0
        %v1323 = vsel %vm441, %v1293, 0.0
        %v1324 = vsel %vm442, %v1292, 0.0
        %v1325 = vsel %vm443, %v1291, 0.0
        %v1326 = vsel %vm444, %v1290, 0.0
        %v1327 = vsel %vm445, %v1289, 0.0
        %v1328 = vsel %vm446, %v1288, 0.0
        %v1329 = vsel %vm447, %v1287, 0.0
        %v1330 = vsel %vm448, %v1286, 0.0
        %v1331 = vsel %vm449, %v1285, 0.0
        %v1332 = vsel %vm450, %v1300, 0.0
        %v1333 = vpack.c.bf16 %v1302, %v1301
        %v1334 = vpack.c.bf16 %v1304, %v1303
        %v1335 = vpack.c.bf16 %v1306, %v1305
        %v1336 = vpack.c.bf16 %v1308, %v1307
        %v1337 = vpack.c.bf16 %v1310, %v1309
        %v1338 = vpack.c.bf16 %v1312, %v1311
        %v1339 = vpack.c.bf16 %v1314, %v1313
        %v1340 = vpack.c.bf16 %v1316, %v1315
        %v1341 = vld [vmem:[%s3] sm:$0xf]
        %v1342 = vld [vmem:[%s3 + $0x4] sm:$0xf]
        %v1343 = vld [vmem:[%s3 + $0x8] sm:$0xf]
        %v1344 = vld [vmem:[%s3 + $0xc] sm:$0xf]
        %v1345 = vpack.c.bf16 %v1222, %v1221
        %v1346 = vpack.c.bf16 %v1224, %v1223
        %v1347 = vpack.c.bf16 %v1226, %v1225
        %v1348 = vpack.c.bf16 %v1228, %v1227
        %v1349 = vpack.c.bf16 %v1230, %v1229
        %v1350 = vpack.c.bf16 %v1232, %v1231
        %v1351 = vpack.c.bf16 %v1234, %v1233
        %v1352 = vpack.c.bf16 %v1236, %v1235
        %s1353 = scalar_lea.vmem %s3, 16
        %v1354 = vld [vmem:[%s1353] sm:$0xf]
        %v1355 = vld [vmem:[%s1353 + $0x4] sm:$0xf]
        %v1356 = vld [vmem:[%s1353 + $0x8] sm:$0xf]
        %v1357 = vld [vmem:[%s1353 + $0xc] sm:$0xf]
        %v1362 = vunpack.c.l.b16 %v1354
        %v1363 = vunpack.c.l.b16 %v1355
        %v1364 = vunpack.c.l.b16 %v1356
        %v1365 = vunpack.c.l.b16 %v1357
        %v1366 = vpack.c.b16 %v1363, %v1362
        %v1367 = vpack.c.b16 %v1365, %v1364
        %v1371 = vsel %vm504, %v1345, 0
        %v1374 = vsel %vm504, %v1346, 0
        %v1377 = vsel %vm504, %v1347, 0
        %v1380 = vsel %vm504, %v1348, 0
        %v1383 = vsel %vm504, %v1349, 0
        %v1386 = vsel %vm504, %v1350, 0
        %v1389 = vsel %vm504, %v1351, 0
        %v1392 = vsel %vm504, %v1352, 0
        %1394 = vmatprep.subr.bf16.mxu0 0
        %1395 = vmatpush1.bf16.msra.mxu0 %v1366
        %1396 = vmatprep.subr.bf16.mxu0 0
        %1397 = vmatpush1.bf16.msra.mxu0 %v1367
        %1398 = vmatprep.subr.bf16.mxu0 0
        %1399 = vmatpush1.bf16.msra.mxu0 0
        %1400 = vmatprep.subr.bf16.mxu0 0
        %1401 = vmatpush1.bf16.msra.mxu0 0
        %1402 = vmatprep.subr.bf16.mxu0 0
        %1403 = vmatpush1.bf16.msra.mxu0 0
        %1404 = vmatprep.subr.bf16.mxu0 0
        %1405 = vmatpush1.bf16.msra.mxu0 0
        %1406 = vmatprep.subr.bf16.mxu0 0
        %1407 = vmatpush1.bf16.msra.mxu0 0
        %1408 = vmatprep.subr.bf16.mxu0 0
        %1409 = vmatpush1.bf16.msra.mxu0 0
        %1410 = vmatprep.subr.bf16.mxu0 0
        %1411 = vmatpush1.bf16.msra.mxu0 0
        %1412 = vmatprep.subr.bf16.mxu0 0
        %1413 = vmatpush1.bf16.msra.mxu0 0
        %1414 = vmatprep.subr.bf16.mxu0 0
        %1415 = vmatpush1.bf16.msra.mxu0 0
        %1416 = vmatprep.subr.bf16.mxu0 0
        %1417 = vmatpush1.bf16.msra.mxu0 0
        %1418 = vmatprep.subr.bf16.mxu0 0
        %1419 = vmatpush1.bf16.msra.mxu0 0
        %1420 = vmatprep.subr.bf16.mxu0 0
        %1421 = vmatpush1.bf16.msra.mxu0 0
        %1422 = vmatprep.subr.bf16.mxu0 0
        %1423 = vmatpush1.bf16.msra.mxu0 0
        %1424 = vmatprep.subr.bf16.mxu0 0
        %1425 = vmatpush1.bf16.msra.mxu0 0
        %1426 = vmatprep.mubr.bf16.mxu0 0
        %1427 = vmatmul.mubr.bf16.gmra.mrb[0].mxu0 %v1371
        %v1428 = vpop.f32.mrb[0].mxu0
        %v1429 = vadd.f32 0.0, %v1428
        %v1430 = vpop.f32.mrb[0].mxu0
        %v1431 = vpop.f32.mrb[0].mxu0
        %v1432 = vadd.f32 0.0, %v1431
        %v1433 = vpop.f32.mrb[0].mxu0
        %1434 = vmatprep.mubr.bf16.mxu0 0
        %1435 = vmatmul.mubr.bf16.gmra.mrb[0].mxu0 %v1374
        %v1436 = vpop.f32.mrb[0].mxu0
        %v1437 = vadd.f32 0.0, %v1436
        %v1438 = vpop.f32.mrb[0].mxu0
        %v1439 = vpop.f32.mrb[0].mxu0
        %v1440 = vadd.f32 0.0, %v1439
        %v1441 = vpop.f32.mrb[0].mxu0
        %1442 = vmatprep.mubr.bf16.mxu0 0
        %1443 = vmatmul.mubr.bf16.gmra.mrb[0].mxu0 %v1377
        %v1444 = vpop.f32.mrb[0].mxu0
        %v1445 = vadd.f32 0.0, %v1444
        %v1446 = vpop.f32.mrb[0].mxu0
        %v1447 = vpop.f32.mrb[0].mxu0
        %v1448 = vadd.f32 0.0, %v1447
        %v1449 = vpop.f32.mrb[0].mxu0
        %1450 = vmatprep.mubr.bf16.mxu0 0
        %1451 = vmatmul.mubr.bf16.gmra.mrb[0].mxu0 %v1380
        %v1452 = vpop.f32.mrb[0].mxu0
        %v1453 = vadd.f32 0.0, %v1452
        %v1454 = vpop.f32.mrb[0].mxu0
        %v1455 = vpop.f32.mrb[0].mxu0
        %v1456 = vadd.f32 0.0, %v1455
        %v1457 = vpop.f32.mrb[0].mxu0
        %1458 = vmatprep.mubr.bf16.mxu0 0
        %1459 = vmatmul.mubr.bf16.gmra.mrb[0].mxu0 %v1383
        %v1460 = vpop.f32.mrb[0].mxu0
        %v1461 = vadd.f32 0.0, %v1460
        %v1462 = vpop.f32.mrb[0].mxu0
        %v1463 = vpop.f32.mrb[0].mxu0
        %v1464 = vadd.f32 0.0, %v1463
        %v1465 = vpop.f32.mrb[0].mxu0
        %1466 = vmatprep.mubr.bf16.mxu0 0
        %1467 = vmatmul.mubr.bf16.gmra.mrb[0].mxu0 %v1386
        %v1468 = vpop.f32.mrb[0].mxu0
        %v1469 = vadd.f32 0.0, %v1468
        %v1470 = vpop.f32.mrb[0].mxu0
        %v1471 = vpop.f32.mrb[0].mxu0
        %v1472 = vadd.f32 0.0, %v1471
        %v1473 = vpop.f32.mrb[0].mxu0
        %1474 = vmatprep.mubr.bf16.mxu0 0
        %1475 = vmatmul.mubr.bf16.gmra.mrb[0].mxu0 %v1389
        %v1476 = vpop.f32.mrb[0].mxu0
        %v1477 = vadd.f32 0.0, %v1476
        %v1478 = vpop.f32.mrb[0].mxu0
        %v1479 = vpop.f32.mrb[0].mxu0
        %v1480 = vadd.f32 0.0, %v1479
        %v1481 = vpop.f32.mrb[0].mxu0
        %1482 = vmatprep.mubr.bf16.mxu0 0
        %1483 = vmatmul.mubr.bf16.gmra.mrb[0].mxu0 %v1392
        %v1484 = vpop.f32.mrb[0].mxu0
        %v1485 = vadd.f32 0.0, %v1484
        %v1486 = vpop.f32.mrb[0].mxu0
        %v1487 = vpop.f32.mrb[0].mxu0
        %v1488 = vadd.f32 0.0, %v1487
        %v1489 = vpop.f32.mrb[0].mxu0
        %1490 = vdwg.mxu0
        %v1495 = vunpack.c.l.b16 %v1341
        %v1496 = vunpack.c.l.b16 %v1342
        %v1497 = vunpack.c.l.b16 %v1343
        %v1498 = vunpack.c.l.b16 %v1344
        %v1499 = vpack.c.b16 %v1496, %v1495
        %v1500 = vpack.c.b16 %v1498, %v1497
        %v1504 = vsel %vm504, %v1333, 0
        %v1507 = vsel %vm504, %v1334, 0
        %v1510 = vsel %vm504, %v1335, 0
        %v1513 = vsel %vm504, %v1336, 0
        %v1516 = vsel %vm504, %v1337, 0
        %v1519 = vsel %vm504, %v1338, 0
        %v1522 = vsel %vm504, %v1339, 0
        %v1525 = vsel %vm504, %v1340, 0
        %1527 = vmatprep.subr.bf16.mxu0 0
        %1528 = vmatpush1.bf16.msra.mxu0 %v1499
        %1529 = vmatprep.subr.bf16.mxu0 0
        %1530 = vmatpush1.bf16.msra.mxu0 %v1500
        %1531 = vmatprep.subr.bf16.mxu0 0
        %1532 = vmatpush1.bf16.msra.mxu0 0
        %1533 = vmatprep.subr.bf16.mxu0 0
        %1534 = vmatpush1.bf16.msra.mxu0 0
        %1535 = vmatprep.subr.bf16.mxu0 0
        %1536 = vmatpush1.bf16.msra.mxu0 0
        %1537 = vmatprep.subr.bf16.mxu0 0
        %1538 = vmatpush1.bf16.msra.mxu0 0
        %1539 = vmatprep.subr.bf16.mxu0 0
        %1540 = vmatpush1.bf16.msra.mxu0 0
        %1541 = vmatprep.subr.bf16.mxu0 0
        %1542 = vmatpush1.bf16.msra.mxu0 0
        %1543 = vmatprep.subr.bf16.mxu0 0
        %1544 = vmatpush1.bf16.msra.mxu0 0
        %1545 = vmatprep.subr.bf16.mxu0 0
        %1546 = vmatpush1.bf16.msra.mxu0 0
        %1547 = vmatprep.subr.bf16.mxu0 0
        %1548 = vmatpush1.bf16.msra.mxu0 0
        %1549 = vmatprep.subr.bf16.mxu0 0
        %1550 = vmatpush1.bf16.msra.mxu0 0
        %1551 = vmatprep.subr.bf16.mxu0 0
        %1552 = vmatpush1.bf16.msra.mxu0 0
        %1553 = vmatprep.subr.bf16.mxu0 0
        %1554 = vmatpush1.bf16.msra.mxu0 0
        %1555 = vmatprep.subr.bf16.mxu0 0
        %1556 = vmatpush1.bf16.msra.mxu0 0
        %1557 = vmatprep.subr.bf16.mxu0 0
        %1558 = vmatpush1.bf16.msra.mxu0 0
        %1559 = vmatprep.mubr.bf16.mxu0 0
        %1560 = vmatmul.mubr.bf16.gmra.mrb[0].mxu0 %v1504
        %v1561 = vpop.f32.mrb[0].mxu0
        %v1562 = vadd.f32 %v1429, %v1561
        %v1563 = vpop.f32.mrb[0].mxu0
        %v1564 = vpop.f32.mrb[0].mxu0
        %v1565 = vadd.f32 %v1432, %v1564
        %v1566 = vpop.f32.mrb[0].mxu0
        %1567 = vmatprep.mubr.bf16.mxu0 0
        %1568 = vmatmul.mubr.bf16.gmra.mrb[0].mxu0 %v1507
        %v1569 = vpop.f32.mrb[0].mxu0
        %v1570 = vadd.f32 %v1437, %v1569
        %v1571 = vpop.f32.mrb[0].mxu0
        %v1572 = vpop.f32.mrb[0].mxu0
        %v1573 = vadd.f32 %v1440, %v1572
        %v1574 = vpop.f32.mrb[0].mxu0
        %1575 = vmatprep.mubr.bf16.mxu0 0
        %1576 = vmatmul.mubr.bf16.gmra.mrb[0].mxu0 %v1510
        %v1577 = vpop.f32.mrb[0].mxu0
        %v1578 = vadd.f32 %v1445, %v1577
        %v1579 = vpop.f32.mrb[0].mxu0
        %v1580 = vpop.f32.mrb[0].mxu0
        %v1581 = vadd.f32 %v1448, %v1580
        %v1582 = vpop.f32.mrb[0].mxu0
        %1583 = vmatprep.mubr.bf16.mxu0 0
        %1584 = vmatmul.mubr.bf16.gmra.mrb[0].mxu0 %v1513
        %v1585 = vpop.f32.mrb[0].mxu0
        %v1586 = vadd.f32 %v1453, %v1585
        %v1587 = vpop.f32.mrb[0].mxu0
        %v1588 = vpop.f32.mrb[0].mxu0
        %v1589 = vadd.f32 %v1456, %v1588
        %v1590 = vpop.f32.mrb[0].mxu0
        %1591 = vmatprep.mubr.bf16.mxu0 0
        %1592 = vmatmul.mubr.bf16.gmra.mrb[0].mxu0 %v1516
        %v1593 = vpop.f32.mrb[0].mxu0
        %v1594 = vadd.f32 %v1461, %v1593
        %v1595 = vpop.f32.mrb[0].mxu0
        %v1596 = vpop.f32.mrb[0].mxu0
        %v1597 = vadd.f32 %v1464, %v1596
        %v1598 = vpop.f32.mrb[0].mxu0
        %1599 = vmatprep.mubr.bf16.mxu0 0
        %1600 = vmatmul.mubr.bf16.gmra.mrb[0].mxu0 %v1519
        %v1601 = vpop.f32.mrb[0].mxu0
        %v1602 = vadd.f32 %v1469, %v1601
        %v1603 = vpop.f32.mrb[0].mxu0
        %v1604 = vpop.f32.mrb[0].mxu0
        %v1605 = vadd.f32 %v1472, %v1604
        %v1606 = vpop.f32.mrb[0].mxu0
        %1607 = vmatprep.mubr.bf16.mxu0 0
        %1608 = vmatmul.mubr.bf16.gmra.mrb[0].mxu0 %v1522
        %v1609 = vpop.f32.mrb[0].mxu0
        %v1610 = vadd.f32 %v1477, %v1609
        %v1611 = vpop.f32.mrb[0].mxu0
        %v1612 = vpop.f32.mrb[0].mxu0
        %v1613 = vadd.f32 %v1480, %v1612
        %v1614 = vpop.f32.mrb[0].mxu0
        %1615 = vmatprep.mubr.bf16.mxu0 0
        %1616 = vmatmul.mubr.bf16.gmra.mrb[0].mxu0 %v1525
        %v1617 = vpop.f32.mrb[0].mxu0
        %v1618 = vadd.f32 %v1485, %v1617
        %v1619 = vpop.f32.mrb[0].mxu0
        %v1620 = vpop.f32.mrb[0].mxu0
        %v1621 = vadd.f32 %v1488, %v1620
        %v1622 = vpop.f32.mrb[0].mxu0
        %1623 = vdwg.mxu0
        %v1624 = vpack.c.bf16 %v1318, %v1317
        %v1625 = vpack.c.bf16 %v1320, %v1319
        %v1626 = vpack.c.bf16 %v1322, %v1321
        %v1627 = vpack.c.bf16 %v1324, %v1323
        %v1628 = vpack.c.bf16 %v1326, %v1325
        %v1629 = vpack.c.bf16 %v1328, %v1327
        %v1630 = vpack.c.bf16 %v1330, %v1329
        %v1631 = vpack.c.bf16 %v1332, %v1331
        %s1632 = scalar_lea.vmem %s3, 32
        %v1633 = vld [vmem:[%s1632] sm:$0xf]
        %v1634 = vld [vmem:[%s1632 + $0x4] sm:$0xf]
        %v1635 = vld [vmem:[%s1632 + $0x8] sm:$0xf]
        %v1636 = vld [vmem:[%s1632 + $0xc] sm:$0xf]
        %v1641 = vunpack.c.l.b16 %v1633
        %v1642 = vunpack.c.l.b16 %v1634
        %v1643 = vunpack.c.l.b16 %v1635
        %v1644 = vunpack.c.l.b16 %v1636
        %v1645 = vpack.c.b16 %v1642, %v1641
        %v1646 = vpack.c.b16 %v1644, %v1643
        %v1650 = vsel %vm504, %v1624, 0
        %v1653 = vsel %vm504, %v1625, 0
        %v1656 = vsel %vm504, %v1626, 0
        %v1659 = vsel %vm504, %v1627, 0
        %v1662 = vsel %vm504, %v1628, 0
        %v1665 = vsel %vm504, %v1629, 0
        %v1668 = vsel %vm504, %v1630, 0
        %v1671 = vsel %vm504, %v1631, 0
        %1673 = vmatprep.subr.bf16.mxu0 0
        %1674 = vmatpush1.bf16.msra.mxu0 %v1645
        %1675 = vmatprep.subr.bf16.mxu0 0
        %1676 = vmatpush1.bf16.msra.mxu0 %v1646
        %1677 = vmatprep.subr.bf16.mxu0 0
        %1678 = vmatpush1.bf16.msra.mxu0 0
        %1679 = vmatprep.subr.bf16.mxu0 0
        %1680 = vmatpush1.bf16.msra.mxu0 0
        %1681 = vmatprep.subr.bf16.mxu0 0
        %1682 = vmatpush1.bf16.msra.mxu0 0
        %1683 = vmatprep.subr.bf16.mxu0 0
        %1684 = vmatpush1.bf16.msra.mxu0 0
        %1685 = vmatprep.subr.bf16.mxu0 0
        %1686 = vmatpush1.bf16.msra.mxu0 0
        %1687 = vmatprep.subr.bf16.mxu0 0
        %1688 = vmatpush1.bf16.msra.mxu0 0
        %1689 = vmatprep.subr.bf16.mxu0 0
        %1690 = vmatpush1.bf16.msra.mxu0 0
        %1691 = vmatprep.subr.bf16.mxu0 0
        %1692 = vmatpush1.bf16.msra.mxu0 0
        %1693 = vmatprep.subr.bf16.mxu0 0
        %1694 = vmatpush1.bf16.msra.mxu0 0
        %1695 = vmatprep.subr.bf16.mxu0 0
        %1696 = vmatpush1.bf16.msra.mxu0 0
        %1697 = vmatprep.subr.bf16.mxu0 0
        %1698 = vmatpush1.bf16.msra.mxu0 0
        %1699 = vmatprep.subr.bf16.mxu0 0
        %1700 = vmatpush1.bf16.msra.mxu0 0
        %1701 = vmatprep.subr.bf16.mxu0 0
        %1702 = vmatpush1.bf16.msra.mxu0 0
        %1703 = vmatprep.subr.bf16.mxu0 0
        %1704 = vmatpush1.bf16.msra.mxu0 0
        %1705 = vmatprep.mubr.bf16.mxu0 0
        %1706 = vmatmul.mubr.bf16.gmra.mrb[0].mxu0 %v1650
        %v1707 = vpop.f32.mrb[0].mxu0
        %v1708 = vadd.f32 0.0, %v1707
        %v1709 = vpop.f32.mrb[0].mxu0
        %v1710 = vpop.f32.mrb[0].mxu0
        %v1711 = vadd.f32 0.0, %v1710
        %v1712 = vpop.f32.mrb[0].mxu0
        %1713 = vmatprep.mubr.bf16.mxu0 0
        %1714 = vmatmul.mubr.bf16.gmra.mrb[0].mxu0 %v1653
        %v1715 = vpop.f32.mrb[0].mxu0
        %v1716 = vadd.f32 0.0, %v1715
        %v1717 = vpop.f32.mrb[0].mxu0
        %v1718 = vpop.f32.mrb[0].mxu0
        %v1719 = vadd.f32 0.0, %v1718
        %v1720 = vpop.f32.mrb[0].mxu0
        %1721 = vmatprep.mubr.bf16.mxu0 0
        %1722 = vmatmul.mubr.bf16.gmra.mrb[0].mxu0 %v1656
        %v1723 = vpop.f32.mrb[0].mxu0
        %v1724 = vadd.f32 0.0, %v1723
        %v1725 = vpop.f32.mrb[0].mxu0
        %v1726 = vpop.f32.mrb[0].mxu0
        %v1727 = vadd.f32 0.0, %v1726
        %v1728 = vpop.f32.mrb[0].mxu0
        %1729 = vmatprep.mubr.bf16.mxu0 0
        %1730 = vmatmul.mubr.bf16.gmra.mrb[0].mxu0 %v1659
        %v1731 = vpop.f32.mrb[0].mxu0
        %v1732 = vadd.f32 0.0, %v1731
        %v1733 = vpop.f32.mrb[0].mxu0
        %v1734 = vpop.f32.mrb[0].mxu0
        %v1735 = vadd.f32 0.0, %v1734
        %v1736 = vpop.f32.mrb[0].mxu0
        %1737 = vmatprep.mubr.bf16.mxu0 0
        %1738 = vmatmul.mubr.bf16.gmra.mrb[0].mxu0 %v1662
        %v1739 = vpop.f32.mrb[0].mxu0
        %v1740 = vadd.f32 0.0, %v1739
        %v1741 = vpop.f32.mrb[0].mxu0
        %v1742 = vpop.f32.mrb[0].mxu0
        %v1743 = vadd.f32 0.0, %v1742
        %v1744 = vpop.f32.mrb[0].mxu0
        %1745 = vmatprep.mubr.bf16.mxu0 0
        %1746 = vmatmul.mubr.bf16.gmra.mrb[0].mxu0 %v1665
        %v1747 = vpop.f32.mrb[0].mxu0
        %v1748 = vadd.f32 0.0, %v1747
        %v1749 = vpop.f32.mrb[0].mxu0
        %v1750 = vpop.f32.mrb[0].mxu0
        %v1751 = vadd.f32 0.0, %v1750
        %v1752 = vpop.f32.mrb[0].mxu0
        %1753 = vmatprep.mubr.bf16.mxu0 0
        %1754 = vmatmul.mubr.bf16.gmra.mrb[0].mxu0 %v1668
        %v1755 = vpop.f32.mrb[0].mxu0
        %v1756 = vadd.f32 0.0, %v1755
        %v1757 = vpop.f32.mrb[0].mxu0
        %v1758 = vpop.f32.mrb[0].mxu0
        %v1759 = vadd.f32 0.0, %v1758
        %v1760 = vpop.f32.mrb[0].mxu0
        %1761 = vmatprep.mubr.bf16.mxu0 0
        %1762 = vmatmul.mubr.bf16.gmra.mrb[0].mxu0 %v1671
        %v1763 = vpop.f32.mrb[0].mxu0
        %v1764 = vadd.f32 0.0, %v1763
        %v1765 = vpop.f32.mrb[0].mxu0
        %v1766 = vpop.f32.mrb[0].mxu0
        %v1767 = vadd.f32 0.0, %v1766
        %v1768 = vpop.f32.mrb[0].mxu0
        %1769 = vdwg.mxu0
        %v1770 = vadd.f32 %v1562, %v1708
        %v1771 = vadd.f32 %v1565, %v1711
        %v1772 = vadd.f32 %v1570, %v1716
        %v1773 = vadd.f32 %v1573, %v1719
        %v1774 = vadd.f32 %v1578, %v1724
        %v1775 = vadd.f32 %v1581, %v1727
        %v1776 = vadd.f32 %v1586, %v1732
        %v1777 = vadd.f32 %v1589, %v1735
        %v1778 = vadd.f32 %v1594, %v1740
        %v1779 = vadd.f32 %v1597, %v1743
        %v1780 = vadd.f32 %v1602, %v1748
        %v1781 = vadd.f32 %v1605, %v1751
        %v1782 = vadd.f32 %v1610, %v1756
        %v1783 = vadd.f32 %v1613, %v1759
        %v1784 = vadd.f32 %v1618, %v1764
        %v1785 = vadd.f32 %v1621, %v1767
        %v1786 = vlaneseq
        %v1787 = vshrl.u32 %v1786, 7
        %v1788 = vsub.s32 3, %v1787
        %v1789 = vrot.slane %v288, %v1788
        %v1790 = vadd.f32 %v1770, %v1789
        %v1791 = vadd.f32 %v1771, %v1789
        %v1792 = vadd.f32 %v1772, %v1789
        %v1793 = vadd.f32 %v1773, %v1789
        %v1794 = vadd.f32 %v1774, %v1789
        %v1795 = vadd.f32 %v1775, %v1789
        %v1796 = vadd.f32 %v1776, %v1789
        %v1797 = vadd.f32 %v1777, %v1789
        %v1798 = vadd.f32 %v1778, %v1789
        %v1799 = vadd.f32 %v1779, %v1789
        %v1800 = vadd.f32 %v1780, %v1789
        %v1801 = vadd.f32 %v1781, %v1789
        %v1802 = vadd.f32 %v1782, %v1789
        %v1803 = vadd.f32 %v1783, %v1789
        %v1804 = vadd.f32 %v1784, %v1789
        %v1805 = vadd.f32 %v1785, %v1789
        %v1806 = vmax.f32 %v1790, 0.0
        %v1807 = vmax.f32 %v1791, 0.0
        %v1808 = vmax.f32 %v1792, 0.0
        %v1809 = vmax.f32 %v1793, 0.0
        %v1810 = vmax.f32 %v1794, 0.0
        %v1811 = vmax.f32 %v1795, 0.0
        %v1812 = vmax.f32 %v1796, 0.0
        %v1813 = vmax.f32 %v1797, 0.0
        %v1814 = vmax.f32 %v1798, 0.0
        %v1815 = vmax.f32 %v1799, 0.0
        %v1816 = vmax.f32 %v1800, 0.0
        %v1817 = vmax.f32 %v1801, 0.0
        %v1818 = vmax.f32 %v1802, 0.0
        %v1819 = vmax.f32 %v1803, 0.0
        %v1820 = vmax.f32 %v1804, 0.0
        %v1821 = vmax.f32 %v1805, 0.0
        %v1822 = vsel %vm504, %v1806, 0.0
        %1823 = vadd.xlane.f32.xlu0 %v1822
        %v1824 = vpop.xlane.xlu0 %1823
        %v1825 = vsel %vm504, %v1807, 0.0
        %1826 = vadd.xlane.f32.xlu0 %v1825
        %v1827 = vpop.xlane.xlu0 %1826
        %v1828 = vsel %vm504, %v1808, 0.0
        %1829 = vadd.xlane.f32.xlu0 %v1828
        %v1830 = vpop.xlane.xlu0 %1829
        %v1831 = vsel %vm504, %v1809, 0.0
        %1832 = vadd.xlane.f32.xlu0 %v1831
        %v1833 = vpop.xlane.xlu0 %1832
        %v1834 = vsel %vm504, %v1810, 0.0
        %1835 = vadd.xlane.f32.xlu0 %v1834
        %v1836 = vpop.xlane.xlu0 %1835
        %v1837 = vsel %vm504, %v1811, 0.0
        %1838 = vadd.xlane.f32.xlu0 %v1837
        %v1839 = vpop.xlane.xlu0 %1838
        %v1840 = vsel %vm504, %v1812, 0.0
        %1841 = vadd.xlane.f32.xlu0 %v1840
        %v1842 = vpop.xlane.xlu0 %1841
        %v1843 = vsel %vm504, %v1813, 0.0
        %1844 = vadd.xlane.f32.xlu0 %v1843
        %v1845 = vpop.xlane.xlu0 %1844
        %v1846 = vsel %vm504, %v1814, 0.0
        %1847 = vadd.xlane.f32.xlu0 %v1846
        %v1848 = vpop.xlane.xlu0 %1847
        %v1849 = vsel %vm504, %v1815, 0.0
        %1850 = vadd.xlane.f32.xlu0 %v1849
        %v1851 = vpop.xlane.xlu0 %1850
        %v1852 = vsel %vm504, %v1816, 0.0
        %1853 = vadd.xlane.f32.xlu0 %v1852
        %v1854 = vpop.xlane.xlu0 %1853
        %v1855 = vsel %vm504, %v1817, 0.0
        %1856 = vadd.xlane.f32.xlu0 %v1855
        %v1857 = vpop.xlane.xlu0 %1856
        %v1858 = vsel %vm504, %v1818, 0.0
        %1859 = vadd.xlane.f32.xlu0 %v1858
        %v1860 = vpop.xlane.xlu0 %1859
        %v1861 = vsel %vm504, %v1819, 0.0
        %1862 = vadd.xlane.f32.xlu0 %v1861
        %v1863 = vpop.xlane.xlu0 %1862
        %v1864 = vsel %vm504, %v1820, 0.0
        %1865 = vadd.xlane.f32.xlu0 %v1864
        %v1866 = vpop.xlane.xlu0 %1865
        %v1867 = vsel %vm504, %v1821, 0.0
        %1868 = vadd.xlane.f32.xlu0 %v1867
        %v1869 = vpop.xlane.xlu0 %1868
        %v1870 = vmul.f32 %v1824, 0.03125
        %v1871 = vmul.f32 %v1827, 0.03125
        %v1872 = vmul.f32 %v1830, 0.03125
        %v1873 = vmul.f32 %v1833, 0.03125
        %v1874 = vmul.f32 %v1836, 0.03125
        %v1875 = vmul.f32 %v1839, 0.03125
        %v1876 = vmul.f32 %v1842, 0.03125
        %v1877 = vmul.f32 %v1845, 0.03125
        %v1878 = vmul.f32 %v1848, 0.03125
        %v1879 = vmul.f32 %v1851, 0.03125
        %v1880 = vmul.f32 %v1854, 0.03125
        %v1881 = vmul.f32 %v1857, 0.03125
        %v1882 = vmul.f32 %v1860, 0.03125
        %v1883 = vmul.f32 %v1863, 0.03125
        %v1884 = vmul.f32 %v1866, 0.03125
        %v1885 = vmul.f32 %v1869, 0.03125
        %v1886 = vmul.f32 %v1806, %v1806
        %v1887 = vmul.f32 %v1807, %v1807
        %v1888 = vmul.f32 %v1808, %v1808
        %v1889 = vmul.f32 %v1809, %v1809
        %v1890 = vmul.f32 %v1810, %v1810
        %v1891 = vmul.f32 %v1811, %v1811
        %v1892 = vmul.f32 %v1812, %v1812
        %v1893 = vmul.f32 %v1813, %v1813
        %v1894 = vmul.f32 %v1814, %v1814
        %v1895 = vmul.f32 %v1815, %v1815
        %v1896 = vmul.f32 %v1816, %v1816
        %v1897 = vmul.f32 %v1817, %v1817
        %v1898 = vmul.f32 %v1818, %v1818
        %v1899 = vmul.f32 %v1819, %v1819
        %v1900 = vmul.f32 %v1820, %v1820
        %v1901 = vmul.f32 %v1821, %v1821
        %v1902 = vsel %vm504, %v1886, 0.0
        %1903 = vadd.xlane.f32.xlu0 %v1902
        %v1904 = vpop.xlane.xlu0 %1903
        %v1905 = vsel %vm504, %v1887, 0.0
        %1906 = vadd.xlane.f32.xlu0 %v1905
        %v1907 = vpop.xlane.xlu0 %1906
        %v1908 = vsel %vm504, %v1888, 0.0
        %1909 = vadd.xlane.f32.xlu0 %v1908
        %v1910 = vpop.xlane.xlu0 %1909
        %v1911 = vsel %vm504, %v1889, 0.0
        %1912 = vadd.xlane.f32.xlu0 %v1911
        %v1913 = vpop.xlane.xlu0 %1912
        %v1914 = vsel %vm504, %v1890, 0.0
        %1915 = vadd.xlane.f32.xlu0 %v1914
        %v1916 = vpop.xlane.xlu0 %1915
        %v1917 = vsel %vm504, %v1891, 0.0
        %1918 = vadd.xlane.f32.xlu0 %v1917
        %v1919 = vpop.xlane.xlu0 %1918
        %v1920 = vsel %vm504, %v1892, 0.0
        %1921 = vadd.xlane.f32.xlu0 %v1920
        %v1922 = vpop.xlane.xlu0 %1921
        %v1923 = vsel %vm504, %v1893, 0.0
        %1924 = vadd.xlane.f32.xlu0 %v1923
        %v1925 = vpop.xlane.xlu0 %1924
        %v1926 = vsel %vm504, %v1894, 0.0
        %1927 = vadd.xlane.f32.xlu0 %v1926
        %v1928 = vpop.xlane.xlu0 %1927
        %v1929 = vsel %vm504, %v1895, 0.0
        %1930 = vadd.xlane.f32.xlu0 %v1929
        %v1931 = vpop.xlane.xlu0 %1930
        %v1932 = vsel %vm504, %v1896, 0.0
        %1933 = vadd.xlane.f32.xlu0 %v1932
        %v1934 = vpop.xlane.xlu0 %1933
        %v1935 = vsel %vm504, %v1897, 0.0
        %1936 = vadd.xlane.f32.xlu0 %v1935
        %v1937 = vpop.xlane.xlu0 %1936
        %v1938 = vsel %vm504, %v1898, 0.0
        %1939 = vadd.xlane.f32.xlu0 %v1938
        %v1940 = vpop.xlane.xlu0 %1939
        %v1941 = vsel %vm504, %v1899, 0.0
        %1942 = vadd.xlane.f32.xlu0 %v1941
        %v1943 = vpop.xlane.xlu0 %1942
        %v1944 = vsel %vm504, %v1900, 0.0
        %1945 = vadd.xlane.f32.xlu0 %v1944
        %v1946 = vpop.xlane.xlu0 %1945
        %v1947 = vsel %vm504, %v1901, 0.0
        %1948 = vadd.xlane.f32.xlu0 %v1947
        %v1949 = vpop.xlane.xlu0 %1948
        %v1950 = vmul.f32 %v1904, 0.03125
        %v1951 = vmul.f32 %v1907, 0.03125
        %v1952 = vmul.f32 %v1910, 0.03125
        %v1953 = vmul.f32 %v1913, 0.03125
        %v1954 = vmul.f32 %v1916, 0.03125
        %v1955 = vmul.f32 %v1919, 0.03125
        %v1956 = vmul.f32 %v1922, 0.03125
        %v1957 = vmul.f32 %v1925, 0.03125
        %v1958 = vmul.f32 %v1928, 0.03125
        %v1959 = vmul.f32 %v1931, 0.03125
        %v1960 = vmul.f32 %v1934, 0.03125
        %v1961 = vmul.f32 %v1937, 0.03125
        %v1962 = vmul.f32 %v1940, 0.03125
        %v1963 = vmul.f32 %v1943, 0.03125
        %v1964 = vmul.f32 %v1946, 0.03125
        %v1965 = vmul.f32 %v1949, 0.03125
        %v1966 = vmul.f32 %v1870, %v1870
        %v1967 = vmul.f32 %v1871, %v1871
        %v1968 = vmul.f32 %v1872, %v1872
        %v1969 = vmul.f32 %v1873, %v1873
        %v1970 = vmul.f32 %v1874, %v1874
        %v1971 = vmul.f32 %v1875, %v1875
        %v1972 = vmul.f32 %v1876, %v1876
        %v1973 = vmul.f32 %v1877, %v1877
        %v1974 = vmul.f32 %v1878, %v1878
        %v1975 = vmul.f32 %v1879, %v1879
        %v1976 = vmul.f32 %v1880, %v1880
        %v1977 = vmul.f32 %v1881, %v1881
        %v1978 = vmul.f32 %v1882, %v1882
        %v1979 = vmul.f32 %v1883, %v1883
        %v1980 = vmul.f32 %v1884, %v1884
        %v1981 = vmul.f32 %v1885, %v1885
        %v1982 = vsub.f32 %v1950, %v1966
        %v1983 = vsub.f32 %v1951, %v1967
        %v1984 = vsub.f32 %v1952, %v1968
        %v1985 = vsub.f32 %v1953, %v1969
        %v1986 = vsub.f32 %v1954, %v1970
        %v1987 = vsub.f32 %v1955, %v1971
        %v1988 = vsub.f32 %v1956, %v1972
        %v1989 = vsub.f32 %v1957, %v1973
        %v1990 = vsub.f32 %v1958, %v1974
        %v1991 = vsub.f32 %v1959, %v1975
        %v1992 = vsub.f32 %v1960, %v1976
        %v1993 = vsub.f32 %v1961, %v1977
        %v1994 = vsub.f32 %v1962, %v1978
        %v1995 = vsub.f32 %v1963, %v1979
        %v1996 = vsub.f32 %v1964, %v1980
        %v1997 = vsub.f32 %v1965, %v1981
        %v1998 = vsub.f32 %v1806, %v1870
        %v1999 = vsub.f32 %v1807, %v1871
        %v2000 = vsub.f32 %v1808, %v1872
        %v2001 = vsub.f32 %v1809, %v1873
        %v2002 = vsub.f32 %v1810, %v1874
        %v2003 = vsub.f32 %v1811, %v1875
        %v2004 = vsub.f32 %v1812, %v1876
        %v2005 = vsub.f32 %v1813, %v1877
        %v2006 = vsub.f32 %v1814, %v1878
        %v2007 = vsub.f32 %v1815, %v1879
        %v2008 = vsub.f32 %v1816, %v1880
        %v2009 = vsub.f32 %v1817, %v1881
        %v2010 = vsub.f32 %v1818, %v1882
        %v2011 = vsub.f32 %v1819, %v1883
        %v2012 = vsub.f32 %v1820, %v1884
        %v2013 = vsub.f32 %v1821, %v1885
        %v2014 = vadd.f32 %v1982, 1e-05
        %v2015 = vadd.f32 %v1983, 1e-05
        %v2016 = vadd.f32 %v1984, 1e-05
        %v2017 = vadd.f32 %v1985, 1e-05
        %v2018 = vadd.f32 %v1986, 1e-05
        %v2019 = vadd.f32 %v1987, 1e-05
        %v2020 = vadd.f32 %v1988, 1e-05
        %v2021 = vadd.f32 %v1989, 1e-05
        %v2022 = vadd.f32 %v1990, 1e-05
        %v2023 = vadd.f32 %v1991, 1e-05
        %v2024 = vadd.f32 %v1992, 1e-05
        %v2025 = vadd.f32 %v1993, 1e-05
        %v2026 = vadd.f32 %v1994, 1e-05
        %v2027 = vadd.f32 %v1995, 1e-05
        %v2028 = vadd.f32 %v1996, 1e-05
        %v2029 = vadd.f32 %v1997, 1e-05
        %v2030 = vrsqrt.pop %v2014
        %v2031 = vrsqrt.pop %v2015
        %v2032 = vrsqrt.pop %v2016
        %v2033 = vrsqrt.pop %v2017
        %v2034 = vrsqrt.pop %v2018
        %v2035 = vrsqrt.pop %v2019
        %v2036 = vrsqrt.pop %v2020
        %v2037 = vrsqrt.pop %v2021
        %v2038 = vrsqrt.pop %v2022
        %v2039 = vrsqrt.pop %v2023
        %v2040 = vrsqrt.pop %v2024
        %v2041 = vrsqrt.pop %v2025
        %v2042 = vrsqrt.pop %v2026
        %v2043 = vrsqrt.pop %v2027
        %v2044 = vrsqrt.pop %v2028
        %v2045 = vrsqrt.pop %v2029
        %v2046 = vmul.f32 %v1998, %v2030
        %v2047 = vmul.f32 %v1999, %v2031
        %v2048 = vmul.f32 %v2000, %v2032
        %v2049 = vmul.f32 %v2001, %v2033
        %v2050 = vmul.f32 %v2002, %v2034
        %v2051 = vmul.f32 %v2003, %v2035
        %v2052 = vmul.f32 %v2004, %v2036
        %v2053 = vmul.f32 %v2005, %v2037
        %v2054 = vmul.f32 %v2006, %v2038
        %v2055 = vmul.f32 %v2007, %v2039
        %v2056 = vmul.f32 %v2008, %v2040
        %v2057 = vmul.f32 %v2009, %v2041
        %v2058 = vmul.f32 %v2010, %v2042
        %v2059 = vmul.f32 %v2011, %v2043
        %v2060 = vmul.f32 %v2012, %v2044
        %v2061 = vmul.f32 %v2013, %v2045
        %v2062 = vlaneseq
        %v2063 = vshrl.u32 %v2062, 7
        %v2064 = vsub.s32 4, %v2063
        %v2065 = vrot.slane %v288, %v2064
        %v2066 = vmul.f32 %v2046, %v2065
        %v2067 = vmul.f32 %v2047, %v2065
        %v2068 = vmul.f32 %v2048, %v2065
        %v2069 = vmul.f32 %v2049, %v2065
        %v2070 = vmul.f32 %v2050, %v2065
        %v2071 = vmul.f32 %v2051, %v2065
        %v2072 = vmul.f32 %v2052, %v2065
        %v2073 = vmul.f32 %v2053, %v2065
        %v2074 = vmul.f32 %v2054, %v2065
        %v2075 = vmul.f32 %v2055, %v2065
        %v2076 = vmul.f32 %v2056, %v2065
        %v2077 = vmul.f32 %v2057, %v2065
        %v2078 = vmul.f32 %v2058, %v2065
        %v2079 = vmul.f32 %v2059, %v2065
        %v2080 = vmul.f32 %v2060, %v2065
        %v2081 = vmul.f32 %v2061, %v2065
        %v2082 = vlaneseq
        %v2083 = vshrl.u32 %v2082, 7
        %v2084 = vsub.s32 5, %v2083
        %v2085 = vrot.slane %v288, %v2084
        %v2086 = vadd.f32 %v2066, %v2085
        %v2087 = vadd.f32 %v2067, %v2085
        %v2088 = vadd.f32 %v2068, %v2085
        %v2089 = vadd.f32 %v2069, %v2085
        %v2090 = vadd.f32 %v2070, %v2085
        %v2091 = vadd.f32 %v2071, %v2085
        %v2092 = vadd.f32 %v2072, %v2085
        %v2093 = vadd.f32 %v2073, %v2085
        %v2094 = vadd.f32 %v2074, %v2085
        %v2095 = vadd.f32 %v2075, %v2085
        %v2096 = vadd.f32 %v2076, %v2085
        %v2097 = vadd.f32 %v2077, %v2085
        %v2098 = vadd.f32 %v2078, %v2085
        %v2099 = vadd.f32 %v2079, %v2085
        %v2100 = vadd.f32 %v2080, %v2085
        %v2101 = vadd.f32 %v2081, %v2085
        %2103 = vset.pattern.permute.xlu0 0
        %2104 = vperm.xlu0 %2103, %v288
        %v2105 = vpop.permute.xlu0 %2104
        %v2106 = vrot.slane %v288, 6
        %v2107 = vrot.slane %v2105, 7
        %v2109 = vsel %vm504, %v2106, 0
        %v2112 = vsel %vm504, %v2086, 0
        %v2115 = vsel %vm504, %v2087, 0
        %v2118 = vsel %vm504, %v2088, 0
        %v2121 = vsel %vm504, %v2089, 0
        %v2124 = vsel %vm504, %v2090, 0
        %v2127 = vsel %vm504, %v2091, 0
        %v2130 = vsel %vm504, %v2092, 0
        %v2133 = vsel %vm504, %v2093, 0
        %v2136 = vsel %vm504, %v2094, 0
        %v2139 = vsel %vm504, %v2095, 0
        %v2142 = vsel %vm504, %v2096, 0
        %v2145 = vsel %vm504, %v2097, 0
        %v2148 = vsel %vm504, %v2098, 0
        %v2151 = vsel %vm504, %v2099, 0
        %v2154 = vsel %vm504, %v2100, 0
        %v2157 = vsel %vm504, %v2101, 0
        %2159 = vmatprep.subr.mxu0 0.0
        %2160 = vmatpush1.xpose.msra.mxu0 %v2112
        %2161 = vmatprep.subr.mxu0 0.0
        %2162 = vmatpush1.xpose.msra.mxu0 %v2115
        %2163 = vmatprep.subr.mxu0 0.0
        %2164 = vmatpush1.xpose.msra.mxu0 %v2118
        %2165 = vmatprep.subr.mxu0 0.0
        %2166 = vmatpush1.xpose.msra.mxu0 %v2121
        %2167 = vmatprep.subr.mxu0 0.0
        %2168 = vmatpush1.xpose.msra.mxu0 %v2124
        %2169 = vmatprep.subr.mxu0 0.0
        %2170 = vmatpush1.xpose.msra.mxu0 %v2127
        %2171 = vmatprep.subr.mxu0 0.0
        %2172 = vmatpush1.xpose.msra.mxu0 %v2130
        %2173 = vmatprep.subr.mxu0 0.0
        %2174 = vmatpush1.xpose.msra.mxu0 %v2133
        %2175 = vmatprep.subr.mxu0 0.0
        %2176 = vmatpush1.xpose.msra.mxu0 %v2136
        %2177 = vmatprep.subr.mxu0 0.0
        %2178 = vmatpush1.xpose.msra.mxu0 %v2139
        %2179 = vmatprep.subr.mxu0 0.0
        %2180 = vmatpush1.xpose.msra.mxu0 %v2142
        %2181 = vmatprep.subr.mxu0 0.0
        %2182 = vmatpush1.xpose.msra.mxu0 %v2145
        %2183 = vmatprep.subr.mxu0 0.0
        %2184 = vmatpush1.xpose.msra.mxu0 %v2148
        %2185 = vmatprep.subr.mxu0 0.0
        %2186 = vmatpush1.xpose.msra.mxu0 %v2151
        %2187 = vmatprep.subr.mxu0 0.0
        %2188 = vmatpush1.xpose.msra.mxu0 %v2154
        %2189 = vmatprep.subr.mxu0 0.0
        %2190 = vmatpush1.xpose.msra.mxu0 %v2157
        %2191 = vmatprep.subr.mxu0 0.0
        %2192 = vmatpush1.xpose.msra.mxu0 0.0
        %2193 = vmatprep.subr.mxu0 0.0
        %2194 = vmatpush1.xpose.msra.mxu0 0.0
        %2195 = vmatprep.subr.mxu0 0.0
        %2196 = vmatpush1.xpose.msra.mxu0 0.0
        %2197 = vmatprep.subr.mxu0 0.0
        %2198 = vmatpush1.xpose.msra.mxu0 0.0
        %2199 = vmatprep.subr.mxu0 0.0
        %2200 = vmatpush1.xpose.msra.mxu0 0.0
        %2201 = vmatprep.subr.mxu0 0.0
        %2202 = vmatpush1.xpose.msra.mxu0 0.0
        %2203 = vmatprep.subr.mxu0 0.0
        %2204 = vmatpush1.xpose.msra.mxu0 0.0
        %2205 = vmatprep.subr.mxu0 0.0
        %2206 = vmatpush1.xpose.msra.mxu0 0.0
        %2207 = vmatprep.subr.mxu0 0.0
        %2208 = vmatpush1.xpose.msra.mxu0 0.0
        %2209 = vmatprep.subr.mxu0 0.0
        %2210 = vmatpush1.xpose.msra.mxu0 0.0
        %2211 = vmatprep.subr.mxu0 0.0
        %2212 = vmatpush1.xpose.msra.mxu0 0.0
        %2213 = vmatprep.subr.mxu0 0.0
        %2214 = vmatpush1.xpose.msra.mxu0 0.0
        %2215 = vmatprep.subr.mxu0 0.0
        %2216 = vmatpush1.xpose.msra.mxu0 0.0
        %2217 = vmatprep.subr.mxu0 0.0
        %2218 = vmatpush1.xpose.msra.mxu0 0.0
        %2219 = vmatprep.subr.mxu0 0.0
        %2220 = vmatpush1.xpose.msra.mxu0 0.0
        %2221 = vmatprep.subr.mxu0 0.0
        %2222 = vmatpush1.xpose.msra.mxu0 0.0
        %2223 = vmatprep.mubr.f32.mxu0 0.0
        %2224 = vmatmul.mubr.f32.gmra.mrb[0].mxu0 %v2109
        %v2225 = vpop.f32.mrb[0].mxu0
        %v2226 = vadd.f32 %v2107, %v2225
        %v2227 = vpop.f32.mrb[0].mxu0
        %2228 = vdwg.mxu0
        %v2229 = vld [vmem:[%s237] sm:$0x1]
        %vm2230 = vcmp.ne.s32.totalorder %v2229, 0
        %v2231 = vsel %vm2230, 0.0, %v2226
        %2232 = vst [vmem:[%s228] sm:$0x1] %v2231
        %s2233 = sand.u32 %s142, 1
        %s2234 = scalar_lea.sflag [#allocation3], %s2233
        %s2235 = sand.u32 %s142, 1
        %s2236 = scalar_lea.vmem [#allocation2], %s2235
        // Predicated region
        $region41: #{tpu_custom_call.1} parent=39 // pred_check
          %p2237 = pneg %p152
        $region42: #{tpu_custom_call.1} parent=39 // pred_check_branch
          %2239 = sbr.rel (%p2237) target = $region44
        $region43: #{tpu_custom_call.1} parent=39 // pred_region
          %s2241 = ssub.s32 16, 16
          %2242 = vsyncadd %s2234, %s2241
          %s2243 = smul.addr %s19, 16
          %s2244 = scalar_lea.hbm %s5, %s2243
          %s2246 = sshll.u32 %s2236, 4
          %s2247 = int_to_ptr.vmem [resolvable:$true] %s2246
          %2249 = dma.vmem_to_hbm [thread:$0]  %s2247, 16, %s2244, %s2234
        $region44: #{tpu_custom_call.1} parent=39 // pred_fallthru
          _
      $region40: #{tpu_custom_call.1} parent=5 // pred_fallthru
        _
      %p2250 = scmp.le.s32.totalorder 2, %s14
      // Predicated region
      $region45: #{tpu_custom_call.1} parent=5 // pred_check
        %p2251 = pneg %p2250
      $region46: #{tpu_custom_call.1} parent=5 // pred_check_branch
        %2253 = sbr.rel (%p2251) target = $region48
      $region47: #{tpu_custom_call.1} parent=5 // pred_region
        %s2254 = ssub.s32 %s14, 2
        // Predicated region
        $region49: #{tpu_custom_call.1} parent=47 // pred_check
          %p2255 = pneg %p158
        $region50: #{tpu_custom_call.1} parent=47 // pred_check_branch
          %2257 = sbr.rel (%p2255) target = $region52
        $region51: #{tpu_custom_call.1} parent=47 // pred_region
          %s2258 = sand.u32 %s143, 1
          %s2259 = scalar_lea.sflag [#allocation3], %s2258
          %s2260 = sand.u32 %s143, 1
          %s2261 = scalar_lea.vmem [#allocation2], %s2260
          %2262 = dma.done %s2259, 16
        $region52: #{tpu_custom_call.1} parent=47 // pred_fallthru
          _
      $region48: #{tpu_custom_call.1} parent=5 // pred_fallthru
        _
    $region6: #{tpu_custom_call.1} parent=1 // loop_footer
      %s18 = sadd.s32 1, %s14
    $region7: #{tpu_custom_call.1} parent=1 // loop_footer_branch
      %13 = sbr.rel target = $region3
    $region8: #{tpu_custom_call.1} parent=1 // loop_exit
      _
    %2263 = vsyncpa [#allocation3], 1
    %s2264 = scalar_lea.sflag [#allocation3], 1
    %2265 = vsyncpa %s2264, 1

</llo_original>
